<compile_context>
chip_gen: v5e
topology: v5e:2x2
jax: 0.10.0
libtpu: 0.0.40
codegen_flags: <defaults>
</compile_context>

<pallas_src>
import functools

import numpy as np
import jax
import jax.numpy as jnp
from jax import lax
from jax.experimental import pallas as pl
from jax.experimental.pallas import tpu as pltpu


def _round_up(n, m):
    return ((n + m - 1) // m) * m


# ---------------------------------------------------------------------------
# Pallas kernel: the entire Discriminator forward in one call.
# refs = (x, W1, b1, W2, b2, ..., Wn, bn, W_last, out); every ref is a
# full-array VMEM block, so activations never leave VMEM between layers.
# ---------------------------------------------------------------------------
def _fused_forward_kernel(*refs, n_main, negative_slope):
    x_ref, o_ref = refs[0], refs[-1]
    h = x_ref[...]                                        # (N, F0) f32
    r = 1
    for _ in range(n_main):
        w, b = refs[r][...], refs[r + 1][...]
        r += 2
        acc = jnp.dot(h.astype(w.dtype), w,               # MXU, f32 accumulate
                      preferred_element_type=jnp.float32)
        acc = acc + b                                     # (N, F) + (1, F), f32 epilogue
        h = jnp.where(acc >= 0, acc, negative_slope * acc)
    w_last = refs[r][...]
    o_ref[...] = jnp.dot(h.astype(w_last.dtype), w_last,
                         preferred_element_type=jnp.float32).astype(o_ref.dtype)


# ---------------------------------------------------------------------------
# Forward wrapper (single pallas_call, lane-dense padded output)
# ---------------------------------------------------------------------------
def discriminator_forward(x_nchw, dense_params):
    """x_nchw: (N, 3, H, W) f32 -> out_src: (N, 1, H/2^R, W/2^R) f32."""
    mats, biases = dense_params["mats"], dense_params["biases"]
    n = x_nchw.shape[0]
    # NCHW flatten == (c, h, w) feature ordering used by the dense operators;
    # no transpose needed.
    x_feat = x_nchw.reshape(n, -1).astype(jnp.float32)
    f0_pad = mats[0].shape[0]
    if f0_pad > x_feat.shape[1]:
        x_feat = jnp.pad(x_feat, ((0, 0), (0, f0_pad - x_feat.shape[1])))

    args = [x_feat]
    for wmat, brow in zip(mats[:-1], biases):
        args.extend([wmat, brow])
    args.append(mats[-1])

    kernel = functools.partial(_fused_forward_kernel,
                               n_main=len(biases), negative_slope=0.01)
    out_pad = pl.pallas_call(
        kernel,
        out_shape=jax.ShapeDtypeStruct((n, mats[-1].shape[1]), jnp.float32),
        compiler_params=pltpu.CompilerParams(
            vmem_limit_bytes=32 * 1024 * 1024),
    )(*args)

    co, ho, wo = dense_params["out_chw"]
    return out_pad[:, : co * ho * wo].reshape(n, co, ho, wo)


# ---------------------------------------------------------------------------
# Parameter construction (deterministic, synthetic) + spectral norm
# ---------------------------------------------------------------------------
def _spectral_normalize(w, n_iter=5, eps=1e-12):
    # NOTE: PyTorch's spectral_norm does 1 power iteration per forward from a
    # persistent random u; here it is applied once at parameter-prep time.
    cout = w.shape[0]
    w2 = w.reshape(cout, -1)
    u = jnp.ones((cout,), w.dtype) / jnp.sqrt(jnp.float32(cout))
    v = None
    for _ in range(n_iter):
        v = w2.T @ u
        v = v / (jnp.linalg.norm(v) + eps)
        u = w2 @ v
        u = u / (jnp.linalg.norm(u) + eps)
    sigma = u @ (w2 @ v)
    return w / sigma


def make_params(key, conv_dim=8, repeat_num=3):
    """Conv weights matching the PyTorch module's channel progression."""
    keys = jax.random.split(key, 2 * repeat_num + 1)
    main = []
    cin, cout = 3, conv_dim
    for i in range(repeat_num):
        w = 0.05 * jax.random.normal(keys[2 * i], (cout, cin, 4, 4),
                                     dtype=jnp.float32)
        b = 0.01 * jax.random.normal(keys[2 * i + 1], (cout,),
                                     dtype=jnp.float32)
        main.append((_spectral_normalize(w), b))
        cin, cout = cout, cout * 2
    w_last = 0.05 * jax.random.normal(keys[-1], (1, cin, 3, 3),
                                      dtype=jnp.float32)
    return {"main": main, "conv1": _spectral_normalize(w_last)}


def _conv_to_dense(w_oihw, H, W, stride, pad):
    """Fold a Conv2d (OIHW weights, zero padding) into an exact dense operator
    over (c, h, w)-flattened features: out_feat = in_feat @ big.  Host-side,
    runs once at parameter-prep time."""
    w = np.asarray(jax.device_get(w_oihw), dtype=np.float32)
    cout, cin, kh, kw = w.shape
    Ho = (H + 2 * pad - kh) // stride + 1
    Wo = (W + 2 * pad - kw) // stride + 1
    big = np.zeros((cin * H * W, cout * Ho * Wo), np.float32)
    ci = np.arange(cin)
    co = np.arange(cout)
    for ho in range(Ho):
        for wo in range(Wo):
            cols = co * (Ho * Wo) + ho * Wo + wo
            for di in range(kh):
                hi = stride * ho - pad + di
                if hi < 0 or hi >= H:
                    continue
                for dj in range(kw):
                    wi = stride * wo - pad + dj
                    if wi < 0 or wi >= W:
                        continue
                    rows = ci * (H * W) + hi * W + wi
                    big[np.ix_(rows, cols)] = w[:, :, di, dj].T   # (cin, cout)
    return big, (Ho, Wo)


def build_dense_params(params, image_size, compute_dtype=jnp.float32):
    """Build VMEM-ready dense operators: all feature dims padded to x128."""
    H = W = image_size
    cin = 3
    f_in_pad = _round_up(cin * H * W, 128)
    mats, biases = [], []
    for (w, b) in params["main"]:
        cout = int(w.shape[0])
        big, (Ho, Wo) = _conv_to_dense(w, H, W, stride=2, pad=1)
        f_out = cout * Ho * Wo
        f_out_pad = _round_up(f_out, 128)
        big_p = np.zeros((f_in_pad, f_out_pad), np.float32)
        big_p[: big.shape[0], : big.shape[1]] = big
        mats.append(jnp.asarray(big_p, dtype=compute_dtype))
        brow = np.zeros((1, f_out_pad), np.float32)
        brow[0, :f_out] = np.repeat(np.asarray(jax.device_get(b), np.float32),
                                    Ho * Wo)
        biases.append(jnp.asarray(brow))          # bias / epilogue stays f32
        H, W, cin, f_in_pad = Ho, Wo, cout, f_out_pad
    # Final 3x3 / stride 1 / pad 1 / no-bias conv to 1 channel.
    big, (Ho, Wo) = _conv_to_dense(params["conv1"], H, W, stride=1, pad=1)
    f_out_pad = _round_up(big.shape[1], 128)      # lane-dense final store
    big_p = np.zeros((f_in_pad, f_out_pad), np.float32)
    big_p[: big.shape[0], : big.shape[1]] = big
    mats.append(jnp.asarray(big_p, dtype=compute_dtype))
    return {"mats": mats, "biases": biases, "out_chw": (1, Ho, Wo)}


# ---------------------------------------------------------------------------
# Pure-JAX reference (lax conv) with identical semantics
# ---------------------------------------------------------------------------
def discriminator_forward_ref(x_nchw, params):
    dn = ("NCHW", "OIHW", "NCHW")
    h = x_nchw
    for (w, b) in params["main"]:
        h = lax.conv_general_dilated(h, w, (2, 2), [(1, 1), (1, 1)],
                                     dimension_numbers=dn)
        h = h + b[None, :, None, None]
        h = jnp.where(h >= 0, h, 0.01 * h)
    return lax.conv_general_dilated(h, params["conv1"], (1, 1),
                                    [(1, 1), (1, 1)], dimension_numbers=dn)


# ---------------------------------------------------------------------------
if __name__ == "__main__":
    key = jax.random.PRNGKey(0)
    k_x, k_p = jax.random.split(key)

    # Small config consistent with the module: image_size=16, conv_dim=8,
    # repeat_num=3  ->  input (2, 3, 16, 16), output (2, 1, 2, 2).
    image_size, conv_dim, repeat_num = 16, 8, 3
    conv_params = make_params(k_p, conv_dim=conv_dim, repeat_num=repeat_num)
    dense_params = build_dense_params(conv_params, image_size=image_size)

    x = jax.random.normal(k_x, (2, 3, image_size, image_size),
                          dtype=jnp.float32)

    out = jax.block_until_ready(discriminator_forward(x, dense_params))
    ref = jax.block_until_ready(discriminator_forward_ref(x, conv_params))

    assert out.shape == (2, 1, 2, 2), out.shape
    assert jnp.allclose(out, ref, rtol=1e-4, atol=1e-4), \
        float(jnp.max(jnp.abs(out - ref)))

    print("KERNEL_OK")
</pallas_src>

<mosaic_0001>
module attributes {stable_mosaic.version = 11 : i64} {
  func.func @_fused_forward_kernel(%arg0: memref<2x768xf32, #tpu.memory_space<vmem>>, %arg1: memref<768x512xf32, #tpu.memory_space<vmem>>, %arg2: memref<1x512xf32, #tpu.memory_space<vmem>>, %arg3: memref<512x256xf32, #tpu.memory_space<vmem>>, %arg4: memref<1x256xf32, #tpu.memory_space<vmem>>, %arg5: memref<256x128xf32, #tpu.memory_space<vmem>>, %arg6: memref<1x128xf32, #tpu.memory_space<vmem>>, %arg7: memref<128x128xf32, #tpu.memory_space<vmem>>, %arg8: memref<2x128xf32, #tpu.memory_space<vmem>>) attributes {dimension_semantics = [], scalar_prefetch = 0 : i64, scratch_operands = 0 : i64, tpu.core_type = #tpu.core_type<tc>} {
    %c0 = arith.constant 0 : index
    %c0_0 = arith.constant 0 : index
    %0 = vector.load %arg0[%c0, %c0_0] : memref<2x768xf32, #tpu.memory_space<vmem>>, vector<2x768xf32>
    %c0_1 = arith.constant 0 : index
    %c0_2 = arith.constant 0 : index
    %1 = vector.load %arg1[%c0_1, %c0_2] : memref<768x512xf32, #tpu.memory_space<vmem>>, vector<768x512xf32>
    %c0_3 = arith.constant 0 : index
    %c0_4 = arith.constant 0 : index
    %2 = vector.load %arg2[%c0_3, %c0_4] : memref<1x512xf32, #tpu.memory_space<vmem>>, vector<1x512xf32>
    %cst = arith.constant dense<0.000000e+00> : vector<2x512xf32>
    %3 = tpu.matmul %0, %1, %cst {dimension_numbers = #tpu.dot_dimension_numbers<[1], [0], [0], [1], [0, 0, 1, 1], [], []>} : vector<2x768xf32>, vector<768x512xf32>, vector<2x512xf32> -> vector<2x512xf32>
    %4 = vector.broadcast %2 : vector<1x512xf32> to vector<2x512xf32>
    %5 = arith.addf %3, %4 : vector<2x512xf32>
    %cst_5 = arith.constant 0.000000e+00 : f32
    %6 = vector.broadcast %cst_5 : f32 to vector<2x512xf32>
    %7 = arith.cmpf oge, %5, %6 : vector<2x512xf32>
    %cst_6 = arith.constant 0.00999999977 : f32
    %8 = vector.broadcast %cst_6 : f32 to vector<2x512xf32>
    %9 = arith.mulf %8, %5 : vector<2x512xf32>
    %10 = arith.select %7, %5, %9 : vector<2x512xi1>, vector<2x512xf32>
    %c0_7 = arith.constant 0 : index
    %c0_8 = arith.constant 0 : index
    %11 = vector.load %arg3[%c0_7, %c0_8] : memref<512x256xf32, #tpu.memory_space<vmem>>, vector<512x256xf32>
    %c0_9 = arith.constant 0 : index
    %c0_10 = arith.constant 0 : index
    %12 = vector.load %arg4[%c0_9, %c0_10] : memref<1x256xf32, #tpu.memory_space<vmem>>, vector<1x256xf32>
    %cst_11 = arith.constant dense<0.000000e+00> : vector<2x256xf32>
    %13 = tpu.matmul %10, %11, %cst_11 {dimension_numbers = #tpu.dot_dimension_numbers<[1], [0], [0], [1], [0, 0, 1, 1], [], []>} : vector<2x512xf32>, vector<512x256xf32>, vector<2x256xf32> -> vector<2x256xf32>
    %14 = vector.broadcast %12 : vector<1x256xf32> to vector<2x256xf32>
    %15 = arith.addf %13, %14 : vector<2x256xf32>
    %cst_12 = arith.constant 0.000000e+00 : f32
    %16 = vector.broadcast %cst_12 : f32 to vector<2x256xf32>
    %17 = arith.cmpf oge, %15, %16 : vector<2x256xf32>
    %cst_13 = arith.constant 0.00999999977 : f32
    %18 = vector.broadcast %cst_13 : f32 to vector<2x256xf32>
    %19 = arith.mulf %18, %15 : vector<2x256xf32>
    %20 = arith.select %17, %15, %19 : vector<2x256xi1>, vector<2x256xf32>
    %c0_14 = arith.constant 0 : index
    %c0_15 = arith.constant 0 : index
    %21 = vector.load %arg5[%c0_14, %c0_15] : memref<256x128xf32, #tpu.memory_space<vmem>>, vector<256x128xf32>
    %c0_16 = arith.constant 0 : index
    %c0_17 = arith.constant 0 : index
    %22 = vector.load %arg6[%c0_16, %c0_17] : memref<1x128xf32, #tpu.memory_space<vmem>>, vector<1x128xf32>
    %cst_18 = arith.constant dense<0.000000e+00> : vector<2x128xf32>
    %23 = tpu.matmul %20, %21, %cst_18 {dimension_numbers = #tpu.dot_dimension_numbers<[1], [0], [0], [1], [0, 0, 1, 1], [], []>} : vector<2x256xf32>, vector<256x128xf32>, vector<2x128xf32> -> vector<2x128xf32>
    %24 = vector.broadcast %22 : vector<1x128xf32> to vector<2x128xf32>
    %25 = arith.addf %23, %24 : vector<2x128xf32>
    %cst_19 = arith.constant 0.000000e+00 : f32
    %26 = vector.broadcast %cst_19 : f32 to vector<2x128xf32>
    %27 = arith.cmpf oge, %25, %26 : vector<2x128xf32>
    %cst_20 = arith.constant 0.00999999977 : f32
    %28 = vector.broadcast %cst_20 : f32 to vector<2x128xf32>
    %29 = arith.mulf %28, %25 : vector<2x128xf32>
    %30 = arith.select %27, %25, %29 : vector<2x128xi1>, vector<2x128xf32>
    %c0_21 = arith.constant 0 : index
    %c0_22 = arith.constant 0 : index
    %31 = vector.load %arg7[%c0_21, %c0_22] : memref<128x128xf32, #tpu.memory_space<vmem>>, vector<128x128xf32>
    %cst_23 = arith.constant dense<0.000000e+00> : vector<2x128xf32>
    %32 = tpu.matmul %30, %31, %cst_23 {dimension_numbers = #tpu.dot_dimension_numbers<[1], [0], [0], [1], [0, 0, 1, 1], [], []>} : vector<2x128xf32>, vector<128x128xf32>, vector<2x128xf32> -> vector<2x128xf32>
    %c0_24 = arith.constant 0 : index
    %c0_25 = arith.constant 0 : index
    %33 = vector.load %arg8[%c0_24, %c0_25] : memref<2x128xf32, #tpu.memory_space<vmem>>, vector<2x128xf32>
    tpu.vector_store %arg8[%c0_24, %c0_25], %32 {strides = array<i32>} : memref<2x128xf32, #tpu.memory_space<vmem>>, vector<2x128xf32>,
    return
  }
}

</mosaic_0001>

<llo_original>
// kernel: tpu_custom_call.1
$region0: #{tpu_custom_call.1}
  #allocation0 [shape = 'u32[]', space=smem, size = 0x4, offset = 0x4, fixed_abs, tag = 'smem constant byte address 0x4 - core index']
  #allocation1 [shape = 'u32[72,128]{1,0:T(1,128)}', space=vmem, size = 0x9000, scoped, tag = 'internal scratch']
  %s0 = inlined_call_operand.hbm [shape: f32[2,768], index: 0, kind: input, shape index: {}]
  %s1 = inlined_call_operand.hbm [shape: f32[768,512], index: 1, kind: input, shape index: {}]
  %s2 = inlined_call_operand.hbm [shape: f32[1,512], index: 2, kind: input, shape index: {}]
  %s3 = inlined_call_operand.hbm [shape: f32[512,256], index: 3, kind: input, shape index: {}]
  %s4 = inlined_call_operand.hbm [shape: f32[1,256], index: 4, kind: input, shape index: {}]
  %s5 = inlined_call_operand.hbm [shape: f32[256,128], index: 5, kind: input, shape index: {}]
  %s6 = inlined_call_operand.hbm [shape: f32[1,128], index: 6, kind: input, shape index: {}]
  %s7 = inlined_call_operand.hbm [shape: f32[128,128], index: 7, kind: input, shape index: {}]
  %s8 = inlined_call_operand.hbm [shape: f32[2,128], index: 8, kind: output, shape index: {}]
  %s9 = sld [smem:[#allocation0]]
  $region74: #{tpu_custom_call.1} parent=0
    _
  %s11 = ssub.s32 1, %s9
  %s12 = scalar_select 0, %s11, %s9
  $region1: #{tpu_custom_call.1} parent=0
    #allocation2 [shape = 'u8[6144]{0}', space=vmem, size = 0x1800, scoped, tag = 'input window, operand 0, single buffered']
    #allocation3 [shape = 's32[1]{0}', space=sflag, size = 0x4, scoped, tag = 'scoped memory for tpu_custom_call.1']
    #allocation4 [shape = 's32[1]{0}', space=sflag, size = 0x4, scoped, tag = 'scoped memory for tpu_custom_call.1']
    #allocation5 [shape = 'u8[1572864]{0}', space=vmem, size = 0x180000, scoped, tag = 'input window, operand 1, single buffered']
    #allocation6 [shape = 's32[1]{0}', space=sflag, size = 0x4, scoped, tag = 'scoped memory for tpu_custom_call.1']
    #allocation7 [shape = 'u8[2048]{0}', space=vmem, size = 0x800, scoped, tag = 'input window, operand 2, single buffered']
    #allocation8 [shape = 'u8[524288]{0}', space=vmem, size = 0x80000, scoped, tag = 'input window, operand 3, single buffered']
    #allocation9 [shape = 's32[1]{0}', space=sflag, size = 0x4, scoped, tag = 'scoped memory for tpu_custom_call.1']
    #allocation10 [shape = 'u8[1024]{0}', space=vmem, size = 0x400, scoped, tag = 'input window, operand 4, single buffered']
    #allocation11 [shape = 'u8[131072]{0}', space=vmem, size = 0x20000, scoped, tag = 'input window, operand 5, single buffered']
    #allocation12 [shape = 's32[1]{0}', space=sflag, size = 0x4, scoped, tag = 'scoped memory for tpu_custom_call.1']
    #allocation13 [shape = 'u8[512]{0}', space=vmem, size = 0x400, scoped, tag = 'input window, operand 6, single buffered']
    #allocation14 [shape = 'u8[65536]{0}', space=vmem, size = 0x10000, scoped, tag = 'input window, operand 7, single buffered']
    #allocation15 [shape = 's32[1]{0}', space=sflag, size = 0x4, scoped, tag = 'scoped memory for tpu_custom_call.1']
    #allocation16 [shape = 'u8[1024]{0}', space=vmem, size = 0x400, scoped, tag = 'output window, operand 0, single buffered']
    %13 = vsyncpa [#allocation3], 0
    %14 = vsyncpa [#allocation6], 0
    %15 = vsyncpa [#allocation9], 0
    %16 = vsyncpa [#allocation12], 0
    %17 = vsyncpa [#allocation15], 0
    %18 = vsyncpa [#allocation4], 0
    // Predicated region
    $region2: #{tpu_custom_call.1} parent=1 // pred_check
      _
    $region3: #{tpu_custom_call.1} parent=1 // pred_check_branch
      %20 = sbr.rel (0) target = $region5
    $region4: #{tpu_custom_call.1} parent=1 // pred_region
      %22 = vsyncadd [#allocation3], 0
      %s24 = sshll.u32 %s0, 4
      %s25 = int_to_ptr.hbm [resolvable:$true] %s24
      %s26 = sshll.u32 [#allocation2], 4
      %s27 = int_to_ptr.vmem [resolvable:$true] %s26
      %29 = dma.hbm_to_vmem [thread:$0]  %s25, 192, %s27, [#allocation3]
    $region5: #{tpu_custom_call.1} parent=1 // pred_fallthru
      _
    // Predicated region
    $region6: #{tpu_custom_call.1} parent=1 // pred_check
      _
    $region7: #{tpu_custom_call.1} parent=1 // pred_check_branch
      %31 = sbr.rel (0) target = $region9
    $region8: #{tpu_custom_call.1} parent=1 // pred_region
      %33 = vsyncadd [#allocation6], 0
      %s34 = sshll.u32 %s1, 4
      %s35 = int_to_ptr.hbm [resolvable:$true] %s34
      %s36 = sshll.u32 [#allocation5], 4
      %s37 = int_to_ptr.vmem [resolvable:$true] %s36
      %42 = dma.hbm_to_vmem [thread:$0]  %s35, 49152, %s37, [#allocation6], 512, 512, 32
    $region9: #{tpu_custom_call.1} parent=1 // pred_fallthru
      _
    // Predicated region
    $region10: #{tpu_custom_call.1} parent=1 // pred_check
      _
    $region11: #{tpu_custom_call.1} parent=1 // pred_check_branch
      %44 = sbr.rel (0) target = $region13
    $region12: #{tpu_custom_call.1} parent=1 // pred_region
      %46 = vsyncadd [#allocation6], 0
      %s48 = sshll.u32 %s2, 4
      %s49 = int_to_ptr.hbm [resolvable:$true] %s48
      %s50 = sshll.u32 [#allocation7], 4
      %s51 = int_to_ptr.vmem [resolvable:$true] %s50
      %53 = dma.hbm_to_vmem [thread:$0]  %s49, 64, %s51, [#allocation6]
    $region13: #{tpu_custom_call.1} parent=1 // pred_fallthru
      _
    // Predicated region
    $region14: #{tpu_custom_call.1} parent=1 // pred_check
      _
    $region15: #{tpu_custom_call.1} parent=1 // pred_check_branch
      %55 = sbr.rel (0) target = $region17
    $region16: #{tpu_custom_call.1} parent=1 // pred_region
      %57 = vsyncadd [#allocation9], 0
      %s58 = sshll.u32 %s3, 4
      %s59 = int_to_ptr.hbm [resolvable:$true] %s58
      %s60 = sshll.u32 [#allocation8], 4
      %s61 = int_to_ptr.vmem [resolvable:$true] %s60
      %66 = dma.hbm_to_vmem [thread:$0]  %s59, 16384, %s61, [#allocation9], 256, 256, 16
    $region17: #{tpu_custom_call.1} parent=1 // pred_fallthru
      _
    // Predicated region
    $region18: #{tpu_custom_call.1} parent=1 // pred_check
      _
    $region19: #{tpu_custom_call.1} parent=1 // pred_check_branch
      %68 = sbr.rel (0) target = $region21
    $region20: #{tpu_custom_call.1} parent=1 // pred_region
      %70 = vsyncadd [#allocation9], 0
      %s72 = sshll.u32 %s4, 4
      %s73 = int_to_ptr.hbm [resolvable:$true] %s72
      %s74 = sshll.u32 [#allocation10], 4
      %s75 = int_to_ptr.vmem [resolvable:$true] %s74
      %77 = dma.hbm_to_vmem [thread:$0]  %s73, 32, %s75, [#allocation9]
    $region21: #{tpu_custom_call.1} parent=1 // pred_fallthru
      _
    // Predicated region
    $region22: #{tpu_custom_call.1} parent=1 // pred_check
      _
    $region23: #{tpu_custom_call.1} parent=1 // pred_check_branch
      %79 = sbr.rel (0) target = $region25
    $region24: #{tpu_custom_call.1} parent=1 // pred_region
      %81 = vsyncadd [#allocation12], 0
      %s82 = sshll.u32 %s5, 4
      %s83 = int_to_ptr.hbm [resolvable:$true] %s82
      %s84 = sshll.u32 [#allocation11], 4
      %s85 = int_to_ptr.vmem [resolvable:$true] %s84
      %90 = dma.hbm_to_vmem [thread:$0]  %s83, 4096, %s85, [#allocation12], 128, 128, 8
    $region25: #{tpu_custom_call.1} parent=1 // pred_fallthru
      _
    // Predicated region
    $region26: #{tpu_custom_call.1} parent=1 // pred_check
      _
    $region27: #{tpu_custom_call.1} parent=1 // pred_check_branch
      %92 = sbr.rel (0) target = $region29
    $region28: #{tpu_custom_call.1} parent=1 // pred_region
      %94 = vsyncadd [#allocation12], 0
      %s96 = sshll.u32 %s6, 4
      %s97 = int_to_ptr.hbm [resolvable:$true] %s96
      %s98 = sshll.u32 [#allocation13], 4
      %s99 = int_to_ptr.vmem [resolvable:$true] %s98
      %101 = dma.hbm_to_vmem [thread:$0]  %s97, 16, %s99, [#allocation12]
    $region29: #{tpu_custom_call.1} parent=1 // pred_fallthru
      _
    // Predicated region
    $region30: #{tpu_custom_call.1} parent=1 // pred_check
      _
    $region31: #{tpu_custom_call.1} parent=1 // pred_check_branch
      %103 = sbr.rel (0) target = $region33
    $region32: #{tpu_custom_call.1} parent=1 // pred_region
      %105 = vsyncadd [#allocation15], 0
      %s106 = sshll.u32 %s7, 4
      %s107 = int_to_ptr.hbm [resolvable:$true] %s106
      %s108 = sshll.u32 [#allocation14], 4
      %s109 = int_to_ptr.vmem [resolvable:$true] %s108
      %114 = dma.hbm_to_vmem [thread:$0]  %s107, 2048, %s109, [#allocation15], 128, 128, 8
    $region33: #{tpu_custom_call.1} parent=1 // pred_fallthru
      _
    // Predicated region
    $region34: #{tpu_custom_call.1} parent=1 // pred_check
      _
    $region35: #{tpu_custom_call.1} parent=1 // pred_check_branch
      %116 = sbr.rel (0) target = $region37
    $region36: #{tpu_custom_call.1} parent=1 // pred_region
      %118 = dma.done [#allocation3], 192
    $region37: #{tpu_custom_call.1} parent=1 // pred_fallthru
      _
    // Predicated region
    $region38: #{tpu_custom_call.1} parent=1 // pred_check
      _
    $region39: #{tpu_custom_call.1} parent=1 // pred_check_branch
      %120 = sbr.rel (0) target = $region41
    $region40: #{tpu_custom_call.1} parent=1 // pred_region
      %122 = dma.done [#allocation6], 49152
    $region41: #{tpu_custom_call.1} parent=1 // pred_fallthru
      _
    // Predicated region
    $region42: #{tpu_custom_call.1} parent=1 // pred_check
      _
    $region43: #{tpu_custom_call.1} parent=1 // pred_check_branch
      %124 = sbr.rel (0) target = $region45
    $region44: #{tpu_custom_call.1} parent=1 // pred_region
      %126 = dma.done [#allocation6], 64
    $region45: #{tpu_custom_call.1} parent=1 // pred_fallthru
      _
    // Predicated region
    $region46: #{tpu_custom_call.1} parent=1 // pred_check
      _
    $region47: #{tpu_custom_call.1} parent=1 // pred_check_branch
      %128 = sbr.rel (0) target = $region49
    $region48: #{tpu_custom_call.1} parent=1 // pred_region
      %130 = dma.done [#allocation9], 16384
    $region49: #{tpu_custom_call.1} parent=1 // pred_fallthru
      _
    // Predicated region
    $region50: #{tpu_custom_call.1} parent=1 // pred_check
      _
    $region51: #{tpu_custom_call.1} parent=1 // pred_check_branch
      %132 = sbr.rel (0) target = $region53
    $region52: #{tpu_custom_call.1} parent=1 // pred_region
      %134 = dma.done [#allocation9], 32
    $region53: #{tpu_custom_call.1} parent=1 // pred_fallthru
      _
    // Predicated region
    $region54: #{tpu_custom_call.1} parent=1 // pred_check
      _
    $region55: #{tpu_custom_call.1} parent=1 // pred_check_branch
      %136 = sbr.rel (0) target = $region57
    $region56: #{tpu_custom_call.1} parent=1 // pred_region
      %138 = dma.done [#allocation12], 4096
    $region57: #{tpu_custom_call.1} parent=1 // pred_fallthru
      _
    // Predicated region
    $region58: #{tpu_custom_call.1} parent=1 // pred_check
      _
    $region59: #{tpu_custom_call.1} parent=1 // pred_check_branch
      %140 = sbr.rel (0) target = $region61
    $region60: #{tpu_custom_call.1} parent=1 // pred_region
      %142 = dma.done [#allocation12], 16
    $region61: #{tpu_custom_call.1} parent=1 // pred_fallthru
      _
    // Predicated region
    $region62: #{tpu_custom_call.1} parent=1 // pred_check
      _
    $region63: #{tpu_custom_call.1} parent=1 // pred_check_branch
      %144 = sbr.rel (0) target = $region65
    $region64: #{tpu_custom_call.1} parent=1 // pred_region
      %146 = dma.done [#allocation15], 2048
    $region65: #{tpu_custom_call.1} parent=1 // pred_fallthru
      _
    %v147 = vld [vmem:[#allocation2] sm:$0xff]
    %v148 = vld [vmem:[#allocation2 + $0x8] sm:$0xf]
    %v149 = vld [vmem:[#allocation5] sm:$0xff]
    %v150 = vld [vmem:[#allocation5 + $0x8] sm:$0xff]
    %v151 = vld [vmem:[#allocation5 + $0x10] sm:$0xff]
    %v152 = vld [vmem:[#allocation5 + $0x18] sm:$0xff]
    %v153 = vld [vmem:[#allocation5 + $0x20] sm:$0xff]
    %v154 = vld [vmem:[#allocation5 + $0x28] sm:$0xff]
    %v155 = vld [vmem:[#allocation5 + $0x30] sm:$0xff]
    %v156 = vld [vmem:[#allocation5 + $0x38] sm:$0xff]
    %v157 = vld [vmem:[#allocation5 + $0x40] sm:$0xff]
    %v158 = vld [vmem:[#allocation5 + $0x48] sm:$0xff]
    %v159 = vld [vmem:[#allocation5 + $0x50] sm:$0xff]
    %v160 = vld [vmem:[#allocation5 + $0x58] sm:$0xff]
    %v161 = vld [vmem:[#allocation5 + $0x60] sm:$0xff]
    %v162 = vld [vmem:[#allocation5 + $0x68] sm:$0xff]
    %v163 = vld [vmem:[#allocation5 + $0x70] sm:$0xff]
    %v164 = vld [vmem:[#allocation5 + $0x78] sm:$0xff]
    %v165 = vld [vmem:[#allocation5 + $0x80] sm:$0xff]
    %v166 = vld [vmem:[#allocation5 + $0x88] sm:$0xff]
    %v167 = vld [vmem:[#allocation5 + $0x90] sm:$0xff]
    %v168 = vld [vmem:[#allocation5 + $0x98] sm:$0xff]
    %v169 = vld [vmem:[#allocation5 + $0xa0] sm:$0xff]
    %v170 = vld [vmem:[#allocation5 + $0xa8] sm:$0xff]
    %v171 = vld [vmem:[#allocation5 + $0xb0] sm:$0xff]
    %v172 = vld [vmem:[#allocation5 + $0xb8] sm:$0xff]
    %v173 = vld [vmem:[#allocation5 + $0xc0] sm:$0xff]
    %v174 = vld [vmem:[#allocation5 + $0xc8] sm:$0xff]
    %v175 = vld [vmem:[#allocation5 + $0xd0] sm:$0xff]
    %v176 = vld [vmem:[#allocation5 + $0xd8] sm:$0xff]
    %v177 = vld [vmem:[#allocation5 + $0xe0] sm:$0xff]
    %v178 = vld [vmem:[#allocation5 + $0xe8] sm:$0xff]
    %v179 = vld [vmem:[#allocation5 + $0xf0] sm:$0xff]
    %v180 = vld [vmem:[#allocation5 + $0xf8] sm:$0xff]
    %v181 = vld [vmem:[#allocation5 + $0x100] sm:$0xff]
    %v182 = vld [vmem:[#allocation5 + $0x108] sm:$0xff]
    %v183 = vld [vmem:[#allocation5 + $0x110] sm:$0xff]
    %v184 = vld [vmem:[#allocation5 + $0x118] sm:$0xff]
    %v185 = vld [vmem:[#allocation5 + $0x120] sm:$0xff]
    %v186 = vld [vmem:[#allocation5 + $0x128] sm:$0xff]
    %v187 = vld [vmem:[#allocation5 + $0x130] sm:$0xff]
    %v188 = vld [vmem:[#allocation5 + $0x138] sm:$0xff]
    %v189 = vld [vmem:[#allocation5 + $0x140] sm:$0xff]
    %v190 = vld [vmem:[#allocation5 + $0x148] sm:$0xff]
    %v191 = vld [vmem:[#allocation5 + $0x150] sm:$0xff]
    %v192 = vld [vmem:[#allocation5 + $0x158] sm:$0xff]
    %v193 = vld [vmem:[#allocation5 + $0x160] sm:$0xff]
    %v194 = vld [vmem:[#allocation5 + $0x168] sm:$0xff]
    %v195 = vld [vmem:[#allocation5 + $0x170] sm:$0xff]
    %v196 = vld [vmem:[#allocation5 + $0x178] sm:$0xff]
    %v197 = vld [vmem:[#allocation5 + $0x180] sm:$0xff]
    %v198 = vld [vmem:[#allocation5 + $0x188] sm:$0xff]
    %v199 = vld [vmem:[#allocation5 + $0x190] sm:$0xff]
    %v200 = vld [vmem:[#allocation5 + $0x198] sm:$0xff]
    %v201 = vld [vmem:[#allocation5 + $0x1a0] sm:$0xff]
    %v202 = vld [vmem:[#allocation5 + $0x1a8] sm:$0xff]
    %v203 = vld [vmem:[#allocation5 + $0x1b0] sm:$0xff]
    %v204 = vld [vmem:[#allocation5 + $0x1b8] sm:$0xff]
    %v205 = vld [vmem:[#allocation5 + $0x1c0] sm:$0xff]
    %v206 = vld [vmem:[#allocation5 + $0x1c8] sm:$0xff]
    %v207 = vld [vmem:[#allocation5 + $0x1d0] sm:$0xff]
    %v208 = vld [vmem:[#allocation5 + $0x1d8] sm:$0xff]
    %v209 = vld [vmem:[#allocation5 + $0x1e0] sm:$0xff]
    %v210 = vld [vmem:[#allocation5 + $0x1e8] sm:$0xff]
    %v211 = vld [vmem:[#allocation5 + $0x1f0] sm:$0xff]
    %v212 = vld [vmem:[#allocation5 + $0x1f8] sm:$0xff]
    %v213 = vld [vmem:[#allocation5 + $0x200] sm:$0xff]
    %v214 = vld [vmem:[#allocation5 + $0x208] sm:$0xff]
    %v215 = vld [vmem:[#allocation5 + $0x210] sm:$0xff]
    %v216 = vld [vmem:[#allocation5 + $0x218] sm:$0xff]
    %v217 = vld [vmem:[#allocation5 + $0x220] sm:$0xff]
    %v218 = vld [vmem:[#allocation5 + $0x228] sm:$0xff]
    %v219 = vld [vmem:[#allocation5 + $0x230] sm:$0xff]
    %v220 = vld [vmem:[#allocation5 + $0x238] sm:$0xff]
    %v221 = vld [vmem:[#allocation5 + $0x240] sm:$0xff]
    %v222 = vld [vmem:[#allocation5 + $0x248] sm:$0xff]
    %v223 = vld [vmem:[#allocation5 + $0x250] sm:$0xff]
    %v224 = vld [vmem:[#allocation5 + $0x258] sm:$0xff]
    %v225 = vld [vmem:[#allocation5 + $0x260] sm:$0xff]
    %v226 = vld [vmem:[#allocation5 + $0x268] sm:$0xff]
    %v227 = vld [vmem:[#allocation5 + $0x270] sm:$0xff]
    %v228 = vld [vmem:[#allocation5 + $0x278] sm:$0xff]
    %v229 = vld [vmem:[#allocation5 + $0x280] sm:$0xff]
    %v230 = vld [vmem:[#allocation5 + $0x288] sm:$0xff]
    %v231 = vld [vmem:[#allocation5 + $0x290] sm:$0xff]
    %v232 = vld [vmem:[#allocation5 + $0x298] sm:$0xff]
    %v233 = vld [vmem:[#allocation5 + $0x2a0] sm:$0xff]
    %v234 = vld [vmem:[#allocation5 + $0x2a8] sm:$0xff]
    %v235 = vld [vmem:[#allocation5 + $0x2b0] sm:$0xff]
    %v236 = vld [vmem:[#allocation5 + $0x2b8] sm:$0xff]
    %v237 = vld [vmem:[#allocation5 + $0x2c0] sm:$0xff]
    %v238 = vld [vmem:[#allocation5 + $0x2c8] sm:$0xff]
    %v239 = vld [vmem:[#allocation5 + $0x2d0] sm:$0xff]
    %v240 = vld [vmem:[#allocation5 + $0x2d8] sm:$0xff]
    %v241 = vld [vmem:[#allocation5 + $0x2e0] sm:$0xff]
    %v242 = vld [vmem:[#allocation5 + $0x2e8] sm:$0xff]
    %v243 = vld [vmem:[#allocation5 + $0x2f0] sm:$0xff]
    %v244 = vld [vmem:[#allocation5 + $0x2f8] sm:$0xff]
    %v245 = vld [vmem:[#allocation5 + $0x300] sm:$0xff]
    %v246 = vld [vmem:[#allocation5 + $0x308] sm:$0xff]
    %v247 = vld [vmem:[#allocation5 + $0x310] sm:$0xff]
    %v248 = vld [vmem:[#allocation5 + $0x318] sm:$0xff]
    %v249 = vld [vmem:[#allocation5 + $0x320] sm:$0xff]
    %v250 = vld [vmem:[#allocation5 + $0x328] sm:$0xff]
    %v251 = vld [vmem:[#allocation5 + $0x330] sm:$0xff]
    %v252 = vld [vmem:[#allocation5 + $0x338] sm:$0xff]
    %v253 = vld [vmem:[#allocation5 + $0x340] sm:$0xff]
    %v254 = vld [vmem:[#allocation5 + $0x348] sm:$0xff]
    %v255 = vld [vmem:[#allocation5 + $0x350] sm:$0xff]
    %v256 = vld [vmem:[#allocation5 + $0x358] sm:$0xff]
    %v257 = vld [vmem:[#allocation5 + $0x360] sm:$0xff]
    %v258 = vld [vmem:[#allocation5 + $0x368] sm:$0xff]
    %v259 = vld [vmem:[#allocation5 + $0x370] sm:$0xff]
    %v260 = vld [vmem:[#allocation5 + $0x378] sm:$0xff]
    %v261 = vld [vmem:[#allocation5 + $0x380] sm:$0xff]
    %v262 = vld [vmem:[#allocation5 + $0x388] sm:$0xff]
    %v263 = vld [vmem:[#allocation5 + $0x390] sm:$0xff]
    %v264 = vld [vmem:[#allocation5 + $0x398] sm:$0xff]
    %v265 = vld [vmem:[#allocation5 + $0x3a0] sm:$0xff]
    %v266 = vld [vmem:[#allocation5 + $0x3a8] sm:$0xff]
    %v267 = vld [vmem:[#allocation5 + $0x3b0] sm:$0xff]
    %v268 = vld [vmem:[#allocation5 + $0x3b8] sm:$0xff]
    %v269 = vld [vmem:[#allocation5 + $0x3c0] sm:$0xff]
    %v270 = vld [vmem:[#allocation5 + $0x3c8] sm:$0xff]
    %v271 = vld [vmem:[#allocation5 + $0x3d0] sm:$0xff]
    %v272 = vld [vmem:[#allocation5 + $0x3d8] sm:$0xff]
    %v273 = vld [vmem:[#allocation5 + $0x3e0] sm:$0xff]
    %v274 = vld [vmem:[#allocation5 + $0x3e8] sm:$0xff]
    %v275 = vld [vmem:[#allocation5 + $0x3f0] sm:$0xff]
    %v276 = vld [vmem:[#allocation5 + $0x3f8] sm:$0xff]
    %v277 = vld [vmem:[#allocation5 + $0x400] sm:$0xff]
    %v278 = vld [vmem:[#allocation5 + $0x408] sm:$0xff]
    %v279 = vld [vmem:[#allocation5 + $0x410] sm:$0xff]
    %v280 = vld [vmem:[#allocation5 + $0x418] sm:$0xff]
    %v281 = vld [vmem:[#allocation5 + $0x420] sm:$0xff]
    %v282 = vld [vmem:[#allocation5 + $0x428] sm:$0xff]
    %v283 = vld [vmem:[#allocation5 + $0x430] sm:$0xff]
    %v284 = vld [vmem:[#allocation5 + $0x438] sm:$0xff]
    %v285 = vld [vmem:[#allocation5 + $0x440] sm:$0xff]
    %v286 = vld [vmem:[#allocation5 + $0x448] sm:$0xff]
    %v287 = vld [vmem:[#allocation5 + $0x450] sm:$0xff]
    %v288 = vld [vmem:[#allocation5 + $0x458] sm:$0xff]
    %v289 = vld [vmem:[#allocation5 + $0x460] sm:$0xff]
    %v290 = vld [vmem:[#allocation5 + $0x468] sm:$0xff]
    %v291 = vld [vmem:[#allocation5 + $0x470] sm:$0xff]
    %v292 = vld [vmem:[#allocation5 + $0x478] sm:$0xff]
    %v293 = vld [vmem:[#allocation5 + $0x480] sm:$0xff]
    %v294 = vld [vmem:[#allocation5 + $0x488] sm:$0xff]
    %v295 = vld [vmem:[#allocation5 + $0x490] sm:$0xff]
    %v296 = vld [vmem:[#allocation5 + $0x498] sm:$0xff]
    %v297 = vld [vmem:[#allocation5 + $0x4a0] sm:$0xff]
    %v298 = vld [vmem:[#allocation5 + $0x4a8] sm:$0xff]
    %v299 = vld [vmem:[#allocation5 + $0x4b0] sm:$0xff]
    %v300 = vld [vmem:[#allocation5 + $0x4b8] sm:$0xff]
    %v301 = vld [vmem:[#allocation5 + $0x4c0] sm:$0xff]
    %v302 = vld [vmem:[#allocation5 + $0x4c8] sm:$0xff]
    %v303 = vld [vmem:[#allocation5 + $0x4d0] sm:$0xff]
    %v304 = vld [vmem:[#allocation5 + $0x4d8] sm:$0xff]
    %v305 = vld [vmem:[#allocation5 + $0x4e0] sm:$0xff]
    %v306 = vld [vmem:[#allocation5 + $0x4e8] sm:$0xff]
    %v307 = vld [vmem:[#allocation5 + $0x4f0] sm:$0xff]
    %v308 = vld [vmem:[#allocation5 + $0x4f8] sm:$0xff]
    %v309 = vld [vmem:[#allocation5 + $0x500] sm:$0xff]
    %v310 = vld [vmem:[#allocation5 + $0x508] sm:$0xff]
    %v311 = vld [vmem:[#allocation5 + $0x510] sm:$0xff]
    %v312 = vld [vmem:[#allocation5 + $0x518] sm:$0xff]
    %v313 = vld [vmem:[#allocation5 + $0x520] sm:$0xff]
    %v314 = vld [vmem:[#allocation5 + $0x528] sm:$0xff]
    %v315 = vld [vmem:[#allocation5 + $0x530] sm:$0xff]
    %v316 = vld [vmem:[#allocation5 + $0x538] sm:$0xff]
    %v317 = vld [vmem:[#allocation5 + $0x540] sm:$0xff]
    %v318 = vld [vmem:[#allocation5 + $0x548] sm:$0xff]
    %v319 = vld [vmem:[#allocation5 + $0x550] sm:$0xff]
    %v320 = vld [vmem:[#allocation5 + $0x558] sm:$0xff]
    %v321 = vld [vmem:[#allocation5 + $0x560] sm:$0xff]
    %v322 = vld [vmem:[#allocation5 + $0x568] sm:$0xff]
    %v323 = vld [vmem:[#allocation5 + $0x570] sm:$0xff]
    %v324 = vld [vmem:[#allocation5 + $0x578] sm:$0xff]
    %v325 = vld [vmem:[#allocation5 + $0x580] sm:$0xff]
    %v326 = vld [vmem:[#allocation5 + $0x588] sm:$0xff]
    %v327 = vld [vmem:[#allocation5 + $0x590] sm:$0xff]
    %v328 = vld [vmem:[#allocation5 + $0x598] sm:$0xff]
    %v329 = vld [vmem:[#allocation5 + $0x5a0] sm:$0xff]
    %v330 = vld [vmem:[#allocation5 + $0x5a8] sm:$0xff]
    %v331 = vld [vmem:[#allocation5 + $0x5b0] sm:$0xff]
    %v332 = vld [vmem:[#allocation5 + $0x5b8] sm:$0xff]
    %v333 = vld [vmem:[#allocation5 + $0x5c0] sm:$0xff]
    %v334 = vld [vmem:[#allocation5 + $0x5c8] sm:$0xff]
    %v335 = vld [vmem:[#allocation5 + $0x5d0] sm:$0xff]
    %v336 = vld [vmem:[#allocation5 + $0x5d8] sm:$0xff]
    %v337 = vld [vmem:[#allocation5 + $0x5e0] sm:$0xff]
    %v338 = vld [vmem:[#allocation5 + $0x5e8] sm:$0xff]
    %v339 = vld [vmem:[#allocation5 + $0x5f0] sm:$0xff]
    %v340 = vld [vmem:[#allocation5 + $0x5f8] sm:$0xff]
    %v341 = vld [vmem:[#allocation5 + $0x600] sm:$0xff]
    %v342 = vld [vmem:[#allocation5 + $0x608] sm:$0xff]
    %v343 = vld [vmem:[#allocation5 + $0x610] sm:$0xff]
    %v344 = vld [vmem:[#allocation5 + $0x618] sm:$0xff]
    %v345 = vld [vmem:[#allocation5 + $0x620] sm:$0xff]
    %v346 = vld [vmem:[#allocation5 + $0x628] sm:$0xff]
    %v347 = vld [vmem:[#allocation5 + $0x630] sm:$0xff]
    %v348 = vld [vmem:[#allocation5 + $0x638] sm:$0xff]
    %v349 = vld [vmem:[#allocation5 + $0x640] sm:$0xff]
    %v350 = vld [vmem:[#allocation5 + $0x648] sm:$0xff]
    %v351 = vld [vmem:[#allocation5 + $0x650] sm:$0xff]
    %v352 = vld [vmem:[#allocation5 + $0x658] sm:$0xff]
    %v353 = vld [vmem:[#allocation5 + $0x660] sm:$0xff]
    %v354 = vld [vmem:[#allocation5 + $0x668] sm:$0xff]
    %v355 = vld [vmem:[#allocation5 + $0x670] sm:$0xff]
    %v356 = vld [vmem:[#allocation5 + $0x678] sm:$0xff]
    %v357 = vld [vmem:[#allocation5 + $0x680] sm:$0xff]
    %v358 = vld [vmem:[#allocation5 + $0x688] sm:$0xff]
    %v359 = vld [vmem:[#allocation5 + $0x690] sm:$0xff]
    %v360 = vld [vmem:[#allocation5 + $0x698] sm:$0xff]
    %v361 = vld [vmem:[#allocation5 + $0x6a0] sm:$0xff]
    %v362 = vld [vmem:[#allocation5 + $0x6a8] sm:$0xff]
    %v363 = vld [vmem:[#allocation5 + $0x6b0] sm:$0xff]
    %v364 = vld [vmem:[#allocation5 + $0x6b8] sm:$0xff]
    %v365 = vld [vmem:[#allocation5 + $0x6c0] sm:$0xff]
    %v366 = vld [vmem:[#allocation5 + $0x6c8] sm:$0xff]
    %v367 = vld [vmem:[#allocation5 + $0x6d0] sm:$0xff]
    %v368 = vld [vmem:[#allocation5 + $0x6d8] sm:$0xff]
    %v369 = vld [vmem:[#allocation5 + $0x6e0] sm:$0xff]
    %v370 = vld [vmem:[#allocation5 + $0x6e8] sm:$0xff]
    %v371 = vld [vmem:[#allocation5 + $0x6f0] sm:$0xff]
    %v372 = vld [vmem:[#allocation5 + $0x6f8] sm:$0xff]
    %v373 = vld [vmem:[#allocation5 + $0x700] sm:$0xff]
    %v374 = vld [vmem:[#allocation5 + $0x708] sm:$0xff]
    %v375 = vld [vmem:[#allocation5 + $0x710] sm:$0xff]
    %v376 = vld [vmem:[#allocation5 + $0x718] sm:$0xff]
    %v377 = vld [vmem:[#allocation5 + $0x720] sm:$0xff]
    %v378 = vld [vmem:[#allocation5 + $0x728] sm:$0xff]
    %v379 = vld [vmem:[#allocation5 + $0x730] sm:$0xff]
    %v380 = vld [vmem:[#allocation5 + $0x738] sm:$0xff]
    %v381 = vld [vmem:[#allocation5 + $0x740] sm:$0xff]
    %v382 = vld [vmem:[#allocation5 + $0x748] sm:$0xff]
    %v383 = vld [vmem:[#allocation5 + $0x750] sm:$0xff]
    %v384 = vld [vmem:[#allocation5 + $0x758] sm:$0xff]
    %v385 = vld [vmem:[#allocation5 + $0x760] sm:$0xff]
    %v386 = vld [vmem:[#allocation5 + $0x768] sm:$0xff]
    %v387 = vld [vmem:[#allocation5 + $0x770] sm:$0xff]
    %v388 = vld [vmem:[#allocation5 + $0x778] sm:$0xff]
    %v389 = vld [vmem:[#allocation5 + $0x780] sm:$0xff]
    %v390 = vld [vmem:[#allocation5 + $0x788] sm:$0xff]
    %v391 = vld [vmem:[#allocation5 + $0x790] sm:$0xff]
    %v392 = vld [vmem:[#allocation5 + $0x798] sm:$0xff]
    %v393 = vld [vmem:[#allocation5 + $0x7a0] sm:$0xff]
    %v394 = vld [vmem:[#allocation5 + $0x7a8] sm:$0xff]
    %v395 = vld [vmem:[#allocation5 + $0x7b0] sm:$0xff]
    %v396 = vld [vmem:[#allocation5 + $0x7b8] sm:$0xff]
    %v397 = vld [vmem:[#allocation5 + $0x7c0] sm:$0xff]
    %v398 = vld [vmem:[#allocation5 + $0x7c8] sm:$0xff]
    %v399 = vld [vmem:[#allocation5 + $0x7d0] sm:$0xff]
    %v400 = vld [vmem:[#allocation5 + $0x7d8] sm:$0xff]
    %v401 = vld [vmem:[#allocation5 + $0x7e0] sm:$0xff]
    %v402 = vld [vmem:[#allocation5 + $0x7e8] sm:$0xff]
    %v403 = vld [vmem:[#allocation5 + $0x7f0] sm:$0xff]
    %v404 = vld [vmem:[#allocation5 + $0x7f8] sm:$0xff]
    %v405 = vld [vmem:[#allocation5 + $0x800] sm:$0xff]
    %v406 = vld [vmem:[#allocation5 + $0x808] sm:$0xff]
    %v407 = vld [vmem:[#allocation5 + $0x810] sm:$0xff]
    %v408 = vld [vmem:[#allocation5 + $0x818] sm:$0xff]
    %v409 = vld [vmem:[#allocation5 + $0x820] sm:$0xff]
    %v410 = vld [vmem:[#allocation5 + $0x828] sm:$0xff]
    %v411 = vld [vmem:[#allocation5 + $0x830] sm:$0xff]
    %v412 = vld [vmem:[#allocation5 + $0x838] sm:$0xff]
    %v413 = vld [vmem:[#allocation5 + $0x840] sm:$0xff]
    %v414 = vld [vmem:[#allocation5 + $0x848] sm:$0xff]
    %v415 = vld [vmem:[#allocation5 + $0x850] sm:$0xff]
    %v416 = vld [vmem:[#allocation5 + $0x858] sm:$0xff]
    %v417 = vld [vmem:[#allocation5 + $0x860] sm:$0xff]
    %v418 = vld [vmem:[#allocation5 + $0x868] sm:$0xff]
    %v419 = vld [vmem:[#allocation5 + $0x870] sm:$0xff]
    %v420 = vld [vmem:[#allocation5 + $0x878] sm:$0xff]
    %v421 = vld [vmem:[#allocation5 + $0x880] sm:$0xff]
    %v422 = vld [vmem:[#allocation5 + $0x888] sm:$0xff]
    %v423 = vld [vmem:[#allocation5 + $0x890] sm:$0xff]
    %v424 = vld [vmem:[#allocation5 + $0x898] sm:$0xff]
    %v425 = vld [vmem:[#allocation5 + $0x8a0] sm:$0xff]
    %v426 = vld [vmem:[#allocation5 + $0x8a8] sm:$0xff]
    %v427 = vld [vmem:[#allocation5 + $0x8b0] sm:$0xff]
    %v428 = vld [vmem:[#allocation5 + $0x8b8] sm:$0xff]
    %v429 = vld [vmem:[#allocation5 + $0x8c0] sm:$0xff]
    %v430 = vld [vmem:[#allocation5 + $0x8c8] sm:$0xff]
    %v431 = vld [vmem:[#allocation5 + $0x8d0] sm:$0xff]
    %v432 = vld [vmem:[#allocation5 + $0x8d8] sm:$0xff]
    %v433 = vld [vmem:[#allocation5 + $0x8e0] sm:$0xff]
    %v434 = vld [vmem:[#allocation5 + $0x8e8] sm:$0xff]
    %v435 = vld [vmem:[#allocation5 + $0x8f0] sm:$0xff]
    %v436 = vld [vmem:[#allocation5 + $0x8f8] sm:$0xff]
    %v437 = vld [vmem:[#allocation5 + $0x900] sm:$0xff]
    %v438 = vld [vmem:[#allocation5 + $0x908] sm:$0xff]
    %v439 = vld [vmem:[#allocation5 + $0x910] sm:$0xff]
    %v440 = vld [vmem:[#allocation5 + $0x918] sm:$0xff]
    %v441 = vld [vmem:[#allocation5 + $0x920] sm:$0xff]
    %v442 = vld [vmem:[#allocation5 + $0x928] sm:$0xff]
    %v443 = vld [vmem:[#allocation5 + $0x930] sm:$0xff]
    %v444 = vld [vmem:[#allocation5 + $0x938] sm:$0xff]
    %v445 = vld [vmem:[#allocation5 + $0x940] sm:$0xff]
    %v446 = vld [vmem:[#allocation5 + $0x948] sm:$0xff]
    %v447 = vld [vmem:[#allocation5 + $0x950] sm:$0xff]
    %v448 = vld [vmem:[#allocation5 + $0x958] sm:$0xff]
    %v449 = vld [vmem:[#allocation5 + $0x960] sm:$0xff]
    %v450 = vld [vmem:[#allocation5 + $0x968] sm:$0xff]
    %v451 = vld [vmem:[#allocation5 + $0x970] sm:$0xff]
    %v452 = vld [vmem:[#allocation5 + $0x978] sm:$0xff]
    %v453 = vld [vmem:[#allocation5 + $0x980] sm:$0xff]
    %v454 = vld [vmem:[#allocation5 + $0x988] sm:$0xff]
    %v455 = vld [vmem:[#allocation5 + $0x990] sm:$0xff]
    %v456 = vld [vmem:[#allocation5 + $0x998] sm:$0xff]
    %v457 = vld [vmem:[#allocation5 + $0x9a0] sm:$0xff]
    %v458 = vld [vmem:[#allocation5 + $0x9a8] sm:$0xff]
    %v459 = vld [vmem:[#allocation5 + $0x9b0] sm:$0xff]
    %v460 = vld [vmem:[#allocation5 + $0x9b8] sm:$0xff]
    %v461 = vld [vmem:[#allocation5 + $0x9c0] sm:$0xff]
    %v462 = vld [vmem:[#allocation5 + $0x9c8] sm:$0xff]
    %v463 = vld [vmem:[#allocation5 + $0x9d0] sm:$0xff]
    %v464 = vld [vmem:[#allocation5 + $0x9d8] sm:$0xff]
    %v465 = vld [vmem:[#allocation5 + $0x9e0] sm:$0xff]
    %v466 = vld [vmem:[#allocation5 + $0x9e8] sm:$0xff]
    %v467 = vld [vmem:[#allocation5 + $0x9f0] sm:$0xff]
    %v468 = vld [vmem:[#allocation5 + $0x9f8] sm:$0xff]
    %v469 = vld [vmem:[#allocation5 + $0xa00] sm:$0xff]
    %v470 = vld [vmem:[#allocation5 + $0xa08] sm:$0xff]
    %v471 = vld [vmem:[#allocation5 + $0xa10] sm:$0xff]
    %v472 = vld [vmem:[#allocation5 + $0xa18] sm:$0xff]
    %v473 = vld [vmem:[#allocation5 + $0xa20] sm:$0xff]
    %v474 = vld [vmem:[#allocation5 + $0xa28] sm:$0xff]
    %v475 = vld [vmem:[#allocation5 + $0xa30] sm:$0xff]
    %v476 = vld [vmem:[#allocation5 + $0xa38] sm:$0xff]
    %v477 = vld [vmem:[#allocation5 + $0xa40] sm:$0xff]
    %v478 = vld [vmem:[#allocation5 + $0xa48] sm:$0xff]
    %v479 = vld [vmem:[#allocation5 + $0xa50] sm:$0xff]
    %v480 = vld [vmem:[#allocation5 + $0xa58] sm:$0xff]
    %v481 = vld [vmem:[#allocation5 + $0xa60] sm:$0xff]
    %v482 = vld [vmem:[#allocation5 + $0xa68] sm:$0xff]
    %v483 = vld [vmem:[#allocation5 + $0xa70] sm:$0xff]
    %v484 = vld [vmem:[#allocation5 + $0xa78] sm:$0xff]
    %v485 = vld [vmem:[#allocation5 + $0xa80] sm:$0xff]
    %v486 = vld [vmem:[#allocation5 + $0xa88] sm:$0xff]
    %v487 = vld [vmem:[#allocation5 + $0xa90] sm:$0xff]
    %v488 = vld [vmem:[#allocation5 + $0xa98] sm:$0xff]
    %v489 = vld [vmem:[#allocation5 + $0xaa0] sm:$0xff]
    %v490 = vld [vmem:[#allocation5 + $0xaa8] sm:$0xff]
    %v491 = vld [vmem:[#allocation5 + $0xab0] sm:$0xff]
    %v492 = vld [vmem:[#allocation5 + $0xab8] sm:$0xff]
    %v493 = vld [vmem:[#allocation5 + $0xac0] sm:$0xff]
    %v494 = vld [vmem:[#allocation5 + $0xac8] sm:$0xff]
    %v495 = vld [vmem:[#allocation5 + $0xad0] sm:$0xff]
    %v496 = vld [vmem:[#allocation5 + $0xad8] sm:$0xff]
    %v497 = vld [vmem:[#allocation5 + $0xae0] sm:$0xff]
    %v498 = vld [vmem:[#allocation5 + $0xae8] sm:$0xff]
    %v499 = vld [vmem:[#allocation5 + $0xaf0] sm:$0xff]
    %v500 = vld [vmem:[#allocation5 + $0xaf8] sm:$0xff]
    %v501 = vld [vmem:[#allocation5 + $0xb00] sm:$0xff]
    %v502 = vld [vmem:[#allocation5 + $0xb08] sm:$0xff]
    %v503 = vld [vmem:[#allocation5 + $0xb10] sm:$0xff]
    %v504 = vld [vmem:[#allocation5 + $0xb18] sm:$0xff]
    %v505 = vld [vmem:[#allocation5 + $0xb20] sm:$0xff]
    %v506 = vld [vmem:[#allocation5 + $0xb28] sm:$0xff]
    %v507 = vld [vmem:[#allocation5 + $0xb30] sm:$0xff]
    %v508 = vld [vmem:[#allocation5 + $0xb38] sm:$0xff]
    %v509 = vld [vmem:[#allocation5 + $0xb40] sm:$0xff]
    %v510 = vld [vmem:[#allocation5 + $0xb48] sm:$0xff]
    %v511 = vld [vmem:[#allocation5 + $0xb50] sm:$0xff]
    %v512 = vld [vmem:[#allocation5 + $0xb58] sm:$0xff]
    %v513 = vld [vmem:[#allocation5 + $0xb60] sm:$0xff]
    %v514 = vld [vmem:[#allocation5 + $0xb68] sm:$0xff]
    %v515 = vld [vmem:[#allocation5 + $0xb70] sm:$0xff]
    %v516 = vld [vmem:[#allocation5 + $0xb78] sm:$0xff]
    %v517 = vld [vmem:[#allocation5 + $0xb80] sm:$0xff]
    %v518 = vld [vmem:[#allocation5 + $0xb88] sm:$0xff]
    %v519 = vld [vmem:[#allocation5 + $0xb90] sm:$0xff]
    %v520 = vld [vmem:[#allocation5 + $0xb98] sm:$0xff]
    %v521 = vld [vmem:[#allocation5 + $0xba0] sm:$0xff]
    %v522 = vld [vmem:[#allocation5 + $0xba8] sm:$0xff]
    %v523 = vld [vmem:[#allocation5 + $0xbb0] sm:$0xff]
    %v524 = vld [vmem:[#allocation5 + $0xbb8] sm:$0xff]
    %v525 = vld [vmem:[#allocation5 + $0xbc0] sm:$0xff]
    %v526 = vld [vmem:[#allocation5 + $0xbc8] sm:$0xff]
    %v527 = vld [vmem:[#allocation5 + $0xbd0] sm:$0xff]
    %v528 = vld [vmem:[#allocation5 + $0xbd8] sm:$0xff]
    %v529 = vld [vmem:[#allocation5 + $0xbe0] sm:$0xff]
    %v530 = vld [vmem:[#allocation5 + $0xbe8] sm:$0xff]
    %v531 = vld [vmem:[#allocation5 + $0xbf0] sm:$0xff]
    %v532 = vld [vmem:[#allocation5 + $0xbf8] sm:$0xff]
    %v533 = vld [vmem:[#allocation7] sm:$0xf]
    %v535 = vperm.slane %v533, 0
    %v536 = vperm.slane %v533, 1
    %v537 = vperm.slane %v533, 2
    %v538 = vperm.slane %v533, 3
    %545 = vst [vmem:[#allocation1] ss:$4 sm:$0xff] %v147
    %s546 = scalar_lea.vmem [#allocation1], 32
    %547 = vst [vmem:[%s546] ss:$4 sm:$0xff] %v148
    %v548 = vld.sshfl [vmem:[#allocation1] sm:$0xff pattern:$0x73625140]
    %v549 = vld.sshfl [vmem:[#allocation1 + $0x8] sm:$0xff pattern:$0x73625140]
    %v550 = vld.sshfl [vmem:[#allocation1 + $0x10] sm:$0xff pattern:$0x73625140]
    %v551 = vld.sshfl [vmem:[#allocation1 + $0x18] sm:$0xff pattern:$0x73625140]
    %v552 = vld.sshfl [vmem:[#allocation1 + $0x20] sm:$0xff pattern:$0x73625140]
    %v553 = vld.sshfl [vmem:[#allocation1 + $0x28] sm:$0xff pattern:$0x73625140]
    %560 = vmatpush.msra.mxu0 %v209
    %561 = vmatpush.msra.mxu0 %v205
    %562 = vmatpush.msra.mxu0 %v201
    %563 = vmatpush.msra.mxu0 %v197
    %564 = vmatpush.msra.mxu0 %v193
    %565 = vmatpush.msra.mxu0 %v189
    %566 = vmatpush.msra.mxu0 %v185
    %567 = vmatpush.msra.mxu0 %v181
    %568 = vmatpush.msra.mxu0 %v177
    %569 = vmatpush.msra.mxu0 %v173
    %570 = vmatpush.msra.mxu0 %v169
    %571 = vmatpush.msra.mxu0 %v165
    %572 = vmatpush.msra.mxu0 %v161
    %573 = vmatpush.msra.mxu0 %v157
    %574 = vmatpush.msra.mxu0 %v153
    %575 = vmatpush.msra.mxu0 %v149
    %576 = vmatmul.f32.gmra.mxu0 %v548
    %v577 = vpop.f32.mrf.mxu0
    %v578 = vadd.f32 %v535, %v577
    %579 = vdwg.mxu0
    %580 = vmatpush.msra.mxu0 %v273
    %581 = vmatpush.msra.mxu0 %v269
    %582 = vmatpush.msra.mxu0 %v265
    %583 = vmatpush.msra.mxu0 %v261
    %584 = vmatpush.msra.mxu0 %v257
    %585 = vmatpush.msra.mxu0 %v253
    %586 = vmatpush.msra.mxu0 %v249
    %587 = vmatpush.msra.mxu0 %v245
    %588 = vmatpush.msra.mxu0 %v241
    %589 = vmatpush.msra.mxu0 %v237
    %590 = vmatpush.msra.mxu0 %v233
    %591 = vmatpush.msra.mxu0 %v229
    %592 = vmatpush.msra.mxu0 %v225
    %593 = vmatpush.msra.mxu0 %v221
    %594 = vmatpush.msra.mxu0 %v217
    %595 = vmatpush.msra.mxu0 %v213
    %596 = vmatmul.f32.gmra.mxu0 %v549
    %v597 = vpop.f32.mrf.mxu0
    %v598 = vadd.f32 %v578, %v597
    %599 = vdwg.mxu0
    %600 = vmatpush.msra.mxu0 %v337
    %601 = vmatpush.msra.mxu0 %v333
    %602 = vmatpush.msra.mxu0 %v329
    %603 = vmatpush.msra.mxu0 %v325
    %604 = vmatpush.msra.mxu0 %v321
    %605 = vmatpush.msra.mxu0 %v317
    %606 = vmatpush.msra.mxu0 %v313
    %607 = vmatpush.msra.mxu0 %v309
    %608 = vmatpush.msra.mxu0 %v305
    %609 = vmatpush.msra.mxu0 %v301
    %610 = vmatpush.msra.mxu0 %v297
    %611 = vmatpush.msra.mxu0 %v293
    %612 = vmatpush.msra.mxu0 %v289
    %613 = vmatpush.msra.mxu0 %v285
    %614 = vmatpush.msra.mxu0 %v281
    %615 = vmatpush.msra.mxu0 %v277
    %616 = vmatmul.f32.gmra.mxu0 %v550
    %v617 = vpop.f32.mrf.mxu0
    %v618 = vadd.f32 %v598, %v617
    %619 = vdwg.mxu0
    %620 = vmatpush.msra.mxu0 %v401
    %621 = vmatpush.msra.mxu0 %v397
    %622 = vmatpush.msra.mxu0 %v393
    %623 = vmatpush.msra.mxu0 %v389
    %624 = vmatpush.msra.mxu0 %v385
    %625 = vmatpush.msra.mxu0 %v381
    %626 = vmatpush.msra.mxu0 %v377
    %627 = vmatpush.msra.mxu0 %v373
    %628 = vmatpush.msra.mxu0 %v369
    %629 = vmatpush.msra.mxu0 %v365
    %630 = vmatpush.msra.mxu0 %v361
    %631 = vmatpush.msra.mxu0 %v357
    %632 = vmatpush.msra.mxu0 %v353
    %633 = vmatpush.msra.mxu0 %v349
    %634 = vmatpush.msra.mxu0 %v345
    %635 = vmatpush.msra.mxu0 %v341
    %636 = vmatmul.f32.gmra.mxu0 %v551
    %v637 = vpop.f32.mrf.mxu0
    %v638 = vadd.f32 %v618, %v637
    %639 = vdwg.mxu0
    %640 = vmatpush.msra.mxu0 %v465
    %641 = vmatpush.msra.mxu0 %v461
    %642 = vmatpush.msra.mxu0 %v457
    %643 = vmatpush.msra.mxu0 %v453
    %644 = vmatpush.msra.mxu0 %v449
    %645 = vmatpush.msra.mxu0 %v445
    %646 = vmatpush.msra.mxu0 %v441
    %647 = vmatpush.msra.mxu0 %v437
    %648 = vmatpush.msra.mxu0 %v433
    %649 = vmatpush.msra.mxu0 %v429
    %650 = vmatpush.msra.mxu0 %v425
    %651 = vmatpush.msra.mxu0 %v421
    %652 = vmatpush.msra.mxu0 %v417
    %653 = vmatpush.msra.mxu0 %v413
    %654 = vmatpush.msra.mxu0 %v409
    %655 = vmatpush.msra.mxu0 %v405
    %656 = vmatmul.f32.gmra.mxu0 %v552
    %v657 = vpop.f32.mrf.mxu0
    %v658 = vadd.f32 %v638, %v657
    %659 = vdwg.mxu0
    %660 = vmatpush.msra.mxu0 %v529
    %661 = vmatpush.msra.mxu0 %v525
    %662 = vmatpush.msra.mxu0 %v521
    %663 = vmatpush.msra.mxu0 %v517
    %664 = vmatpush.msra.mxu0 %v513
    %665 = vmatpush.msra.mxu0 %v509
    %666 = vmatpush.msra.mxu0 %v505
    %667 = vmatpush.msra.mxu0 %v501
    %668 = vmatpush.msra.mxu0 %v497
    %669 = vmatpush.msra.mxu0 %v493
    %670 = vmatpush.msra.mxu0 %v489
    %671 = vmatpush.msra.mxu0 %v485
    %672 = vmatpush.msra.mxu0 %v481
    %673 = vmatpush.msra.mxu0 %v477
    %674 = vmatpush.msra.mxu0 %v473
    %675 = vmatpush.msra.mxu0 %v469
    %676 = vmatmul.f32.gmra.mxu0 %v553
    %v677 = vpop.f32.mrf.mxu0
    %v678 = vadd.f32 %v658, %v677
    %679 = vdwg.mxu0
    %680 = vmatpush.msra.mxu0 %v210
    %681 = vmatpush.msra.mxu0 %v206
    %682 = vmatpush.msra.mxu0 %v202
    %683 = vmatpush.msra.mxu0 %v198
    %684 = vmatpush.msra.mxu0 %v194
    %685 = vmatpush.msra.mxu0 %v190
    %686 = vmatpush.msra.mxu0 %v186
    %687 = vmatpush.msra.mxu0 %v182
    %688 = vmatpush.msra.mxu0 %v178
    %689 = vmatpush.msra.mxu0 %v174
    %690 = vmatpush.msra.mxu0 %v170
    %691 = vmatpush.msra.mxu0 %v166
    %692 = vmatpush.msra.mxu0 %v162
    %693 = vmatpush.msra.mxu0 %v158
    %694 = vmatpush.msra.mxu0 %v154
    %695 = vmatpush.msra.mxu0 %v150
    %696 = vmatmul.f32.gmra.mxu0 %v548
    %v697 = vpop.f32.mrf.mxu0
    %v698 = vadd.f32 %v536, %v697
    %699 = vdwg.mxu0
    %700 = vmatpush.msra.mxu0 %v274
    %701 = vmatpush.msra.mxu0 %v270
    %702 = vmatpush.msra.mxu0 %v266
    %703 = vmatpush.msra.mxu0 %v262
    %704 = vmatpush.msra.mxu0 %v258
    %705 = vmatpush.msra.mxu0 %v254
    %706 = vmatpush.msra.mxu0 %v250
    %707 = vmatpush.msra.mxu0 %v246
    %708 = vmatpush.msra.mxu0 %v242
    %709 = vmatpush.msra.mxu0 %v238
    %710 = vmatpush.msra.mxu0 %v234
    %711 = vmatpush.msra.mxu0 %v230
    %712 = vmatpush.msra.mxu0 %v226
    %713 = vmatpush.msra.mxu0 %v222
    %714 = vmatpush.msra.mxu0 %v218
    %715 = vmatpush.msra.mxu0 %v214
    %716 = vmatmul.f32.gmra.mxu0 %v549
    %v717 = vpop.f32.mrf.mxu0
    %v718 = vadd.f32 %v698, %v717
    %719 = vdwg.mxu0
    %720 = vmatpush.msra.mxu0 %v338
    %721 = vmatpush.msra.mxu0 %v334
    %722 = vmatpush.msra.mxu0 %v330
    %723 = vmatpush.msra.mxu0 %v326
    %724 = vmatpush.msra.mxu0 %v322
    %725 = vmatpush.msra.mxu0 %v318
    %726 = vmatpush.msra.mxu0 %v314
    %727 = vmatpush.msra.mxu0 %v310
    %728 = vmatpush.msra.mxu0 %v306
    %729 = vmatpush.msra.mxu0 %v302
    %730 = vmatpush.msra.mxu0 %v298
    %731 = vmatpush.msra.mxu0 %v294
    %732 = vmatpush.msra.mxu0 %v290
    %733 = vmatpush.msra.mxu0 %v286
    %734 = vmatpush.msra.mxu0 %v282
    %735 = vmatpush.msra.mxu0 %v278
    %736 = vmatmul.f32.gmra.mxu0 %v550
    %v737 = vpop.f32.mrf.mxu0
    %v738 = vadd.f32 %v718, %v737
    %739 = vdwg.mxu0
    %740 = vmatpush.msra.mxu0 %v402
    %741 = vmatpush.msra.mxu0 %v398
    %742 = vmatpush.msra.mxu0 %v394
    %743 = vmatpush.msra.mxu0 %v390
    %744 = vmatpush.msra.mxu0 %v386
    %745 = vmatpush.msra.mxu0 %v382
    %746 = vmatpush.msra.mxu0 %v378
    %747 = vmatpush.msra.mxu0 %v374
    %748 = vmatpush.msra.mxu0 %v370
    %749 = vmatpush.msra.mxu0 %v366
    %750 = vmatpush.msra.mxu0 %v362
    %751 = vmatpush.msra.mxu0 %v358
    %752 = vmatpush.msra.mxu0 %v354
    %753 = vmatpush.msra.mxu0 %v350
    %754 = vmatpush.msra.mxu0 %v346
    %755 = vmatpush.msra.mxu0 %v342
    %756 = vmatmul.f32.gmra.mxu0 %v551
    %v757 = vpop.f32.mrf.mxu0
    %v758 = vadd.f32 %v738, %v757
    %759 = vdwg.mxu0
    %760 = vmatpush.msra.mxu0 %v466
    %761 = vmatpush.msra.mxu0 %v462
    %762 = vmatpush.msra.mxu0 %v458
    %763 = vmatpush.msra.mxu0 %v454
    %764 = vmatpush.msra.mxu0 %v450
    %765 = vmatpush.msra.mxu0 %v446
    %766 = vmatpush.msra.mxu0 %v442
    %767 = vmatpush.msra.mxu0 %v438
    %768 = vmatpush.msra.mxu0 %v434
    %769 = vmatpush.msra.mxu0 %v430
    %770 = vmatpush.msra.mxu0 %v426
    %771 = vmatpush.msra.mxu0 %v422
    %772 = vmatpush.msra.mxu0 %v418
    %773 = vmatpush.msra.mxu0 %v414
    %774 = vmatpush.msra.mxu0 %v410
    %775 = vmatpush.msra.mxu0 %v406
    %776 = vmatmul.f32.gmra.mxu0 %v552
    %v777 = vpop.f32.mrf.mxu0
    %v778 = vadd.f32 %v758, %v777
    %779 = vdwg.mxu0
    %780 = vmatpush.msra.mxu0 %v530
    %781 = vmatpush.msra.mxu0 %v526
    %782 = vmatpush.msra.mxu0 %v522
    %783 = vmatpush.msra.mxu0 %v518
    %784 = vmatpush.msra.mxu0 %v514
    %785 = vmatpush.msra.mxu0 %v510
    %786 = vmatpush.msra.mxu0 %v506
    %787 = vmatpush.msra.mxu0 %v502
    %788 = vmatpush.msra.mxu0 %v498
    %789 = vmatpush.msra.mxu0 %v494
    %790 = vmatpush.msra.mxu0 %v490
    %791 = vmatpush.msra.mxu0 %v486
    %792 = vmatpush.msra.mxu0 %v482
    %793 = vmatpush.msra.mxu0 %v478
    %794 = vmatpush.msra.mxu0 %v474
    %795 = vmatpush.msra.mxu0 %v470
    %796 = vmatmul.f32.gmra.mxu0 %v553
    %v797 = vpop.f32.mrf.mxu0
    %v798 = vadd.f32 %v778, %v797
    %799 = vdwg.mxu0
    %800 = vmatpush.msra.mxu0 %v211
    %801 = vmatpush.msra.mxu0 %v207
    %802 = vmatpush.msra.mxu0 %v203
    %803 = vmatpush.msra.mxu0 %v199
    %804 = vmatpush.msra.mxu0 %v195
    %805 = vmatpush.msra.mxu0 %v191
    %806 = vmatpush.msra.mxu0 %v187
    %807 = vmatpush.msra.mxu0 %v183
    %808 = vmatpush.msra.mxu0 %v179
    %809 = vmatpush.msra.mxu0 %v175
    %810 = vmatpush.msra.mxu0 %v171
    %811 = vmatpush.msra.mxu0 %v167
    %812 = vmatpush.msra.mxu0 %v163
    %813 = vmatpush.msra.mxu0 %v159
    %814 = vmatpush.msra.mxu0 %v155
    %815 = vmatpush.msra.mxu0 %v151
    %816 = vmatmul.f32.gmra.mxu0 %v548
    %v817 = vpop.f32.mrf.mxu0
    %v818 = vadd.f32 %v537, %v817
    %819 = vdwg.mxu0
    %820 = vmatpush.msra.mxu0 %v275
    %821 = vmatpush.msra.mxu0 %v271
    %822 = vmatpush.msra.mxu0 %v267
    %823 = vmatpush.msra.mxu0 %v263
    %824 = vmatpush.msra.mxu0 %v259
    %825 = vmatpush.msra.mxu0 %v255
    %826 = vmatpush.msra.mxu0 %v251
    %827 = vmatpush.msra.mxu0 %v247
    %828 = vmatpush.msra.mxu0 %v243
    %829 = vmatpush.msra.mxu0 %v239
    %830 = vmatpush.msra.mxu0 %v235
    %831 = vmatpush.msra.mxu0 %v231
    %832 = vmatpush.msra.mxu0 %v227
    %833 = vmatpush.msra.mxu0 %v223
    %834 = vmatpush.msra.mxu0 %v219
    %835 = vmatpush.msra.mxu0 %v215
    %836 = vmatmul.f32.gmra.mxu0 %v549
    %v837 = vpop.f32.mrf.mxu0
    %v838 = vadd.f32 %v818, %v837
    %839 = vdwg.mxu0
    %840 = vmatpush.msra.mxu0 %v339
    %841 = vmatpush.msra.mxu0 %v335
    %842 = vmatpush.msra.mxu0 %v331
    %843 = vmatpush.msra.mxu0 %v327
    %844 = vmatpush.msra.mxu0 %v323
    %845 = vmatpush.msra.mxu0 %v319
    %846 = vmatpush.msra.mxu0 %v315
    %847 = vmatpush.msra.mxu0 %v311
    %848 = vmatpush.msra.mxu0 %v307
    %849 = vmatpush.msra.mxu0 %v303
    %850 = vmatpush.msra.mxu0 %v299
    %851 = vmatpush.msra.mxu0 %v295
    %852 = vmatpush.msra.mxu0 %v291
    %853 = vmatpush.msra.mxu0 %v287
    %854 = vmatpush.msra.mxu0 %v283
    %855 = vmatpush.msra.mxu0 %v279
    %856 = vmatmul.f32.gmra.mxu0 %v550
    %v857 = vpop.f32.mrf.mxu0
    %v858 = vadd.f32 %v838, %v857
    %859 = vdwg.mxu0
    %860 = vmatpush.msra.mxu0 %v403
    %861 = vmatpush.msra.mxu0 %v399
    %862 = vmatpush.msra.mxu0 %v395
    %863 = vmatpush.msra.mxu0 %v391
    %864 = vmatpush.msra.mxu0 %v387
    %865 = vmatpush.msra.mxu0 %v383
    %866 = vmatpush.msra.mxu0 %v379
    %867 = vmatpush.msra.mxu0 %v375
    %868 = vmatpush.msra.mxu0 %v371
    %869 = vmatpush.msra.mxu0 %v367
    %870 = vmatpush.msra.mxu0 %v363
    %871 = vmatpush.msra.mxu0 %v359
    %872 = vmatpush.msra.mxu0 %v355
    %873 = vmatpush.msra.mxu0 %v351
    %874 = vmatpush.msra.mxu0 %v347
    %875 = vmatpush.msra.mxu0 %v343
    %876 = vmatmul.f32.gmra.mxu0 %v551
    %v877 = vpop.f32.mrf.mxu0
    %v878 = vadd.f32 %v858, %v877
    %879 = vdwg.mxu0
    %880 = vmatpush.msra.mxu0 %v467
    %881 = vmatpush.msra.mxu0 %v463
    %882 = vmatpush.msra.mxu0 %v459
    %883 = vmatpush.msra.mxu0 %v455
    %884 = vmatpush.msra.mxu0 %v451
    %885 = vmatpush.msra.mxu0 %v447
    %886 = vmatpush.msra.mxu0 %v443
    %887 = vmatpush.msra.mxu0 %v439
    %888 = vmatpush.msra.mxu0 %v435
    %889 = vmatpush.msra.mxu0 %v431
    %890 = vmatpush.msra.mxu0 %v427
    %891 = vmatpush.msra.mxu0 %v423
    %892 = vmatpush.msra.mxu0 %v419
    %893 = vmatpush.msra.mxu0 %v415
    %894 = vmatpush.msra.mxu0 %v411
    %895 = vmatpush.msra.mxu0 %v407
    %896 = vmatmul.f32.gmra.mxu0 %v552
    %v897 = vpop.f32.mrf.mxu0
    %v898 = vadd.f32 %v878, %v897
    %899 = vdwg.mxu0
    %900 = vmatpush.msra.mxu0 %v531
    %901 = vmatpush.msra.mxu0 %v527
    %902 = vmatpush.msra.mxu0 %v523
    %903 = vmatpush.msra.mxu0 %v519
    %904 = vmatpush.msra.mxu0 %v515
    %905 = vmatpush.msra.mxu0 %v511
    %906 = vmatpush.msra.mxu0 %v507
    %907 = vmatpush.msra.mxu0 %v503
    %908 = vmatpush.msra.mxu0 %v499
    %909 = vmatpush.msra.mxu0 %v495
    %910 = vmatpush.msra.mxu0 %v491
    %911 = vmatpush.msra.mxu0 %v487
    %912 = vmatpush.msra.mxu0 %v483
    %913 = vmatpush.msra.mxu0 %v479
    %914 = vmatpush.msra.mxu0 %v475
    %915 = vmatpush.msra.mxu0 %v471
    %916 = vmatmul.f32.gmra.mxu0 %v553
    %v917 = vpop.f32.mrf.mxu0
    %v918 = vadd.f32 %v898, %v917
    %919 = vdwg.mxu0
    %920 = vmatpush.msra.mxu0 %v212
    %921 = vmatpush.msra.mxu0 %v208
    %922 = vmatpush.msra.mxu0 %v204
    %923 = vmatpush.msra.mxu0 %v200
    %924 = vmatpush.msra.mxu0 %v196
    %925 = vmatpush.msra.mxu0 %v192
    %926 = vmatpush.msra.mxu0 %v188
    %927 = vmatpush.msra.mxu0 %v184
    %928 = vmatpush.msra.mxu0 %v180
    %929 = vmatpush.msra.mxu0 %v176
    %930 = vmatpush.msra.mxu0 %v172
    %931 = vmatpush.msra.mxu0 %v168
    %932 = vmatpush.msra.mxu0 %v164
    %933 = vmatpush.msra.mxu0 %v160
    %934 = vmatpush.msra.mxu0 %v156
    %935 = vmatpush.msra.mxu0 %v152
    %936 = vmatmul.f32.gmra.mxu0 %v548
    %v937 = vpop.f32.mrf.mxu0
    %v938 = vadd.f32 %v538, %v937
    %939 = vdwg.mxu0
    %940 = vmatpush.msra.mxu0 %v276
    %941 = vmatpush.msra.mxu0 %v272
    %942 = vmatpush.msra.mxu0 %v268
    %943 = vmatpush.msra.mxu0 %v264
    %944 = vmatpush.msra.mxu0 %v260
    %945 = vmatpush.msra.mxu0 %v256
    %946 = vmatpush.msra.mxu0 %v252
    %947 = vmatpush.msra.mxu0 %v248
    %948 = vmatpush.msra.mxu0 %v244
    %949 = vmatpush.msra.mxu0 %v240
    %950 = vmatpush.msra.mxu0 %v236
    %951 = vmatpush.msra.mxu0 %v232
    %952 = vmatpush.msra.mxu0 %v228
    %953 = vmatpush.msra.mxu0 %v224
    %954 = vmatpush.msra.mxu0 %v220
    %955 = vmatpush.msra.mxu0 %v216
    %956 = vmatmul.f32.gmra.mxu0 %v549
    %v957 = vpop.f32.mrf.mxu0
    %v958 = vadd.f32 %v938, %v957
    %959 = vdwg.mxu0
    %960 = vmatpush.msra.mxu0 %v340
    %961 = vmatpush.msra.mxu0 %v336
    %962 = vmatpush.msra.mxu0 %v332
    %963 = vmatpush.msra.mxu0 %v328
    %964 = vmatpush.msra.mxu0 %v324
    %965 = vmatpush.msra.mxu0 %v320
    %966 = vmatpush.msra.mxu0 %v316
    %967 = vmatpush.msra.mxu0 %v312
    %968 = vmatpush.msra.mxu0 %v308
    %969 = vmatpush.msra.mxu0 %v304
    %970 = vmatpush.msra.mxu0 %v300
    %971 = vmatpush.msra.mxu0 %v296
    %972 = vmatpush.msra.mxu0 %v292
    %973 = vmatpush.msra.mxu0 %v288
    %974 = vmatpush.msra.mxu0 %v284
    %975 = vmatpush.msra.mxu0 %v280
    %976 = vmatmul.f32.gmra.mxu0 %v550
    %v977 = vpop.f32.mrf.mxu0
    %v978 = vadd.f32 %v958, %v977
    %979 = vdwg.mxu0
    %980 = vmatpush.msra.mxu0 %v404
    %981 = vmatpush.msra.mxu0 %v400
    %982 = vmatpush.msra.mxu0 %v396
    %983 = vmatpush.msra.mxu0 %v392
    %984 = vmatpush.msra.mxu0 %v388
    %985 = vmatpush.msra.mxu0 %v384
    %986 = vmatpush.msra.mxu0 %v380
    %987 = vmatpush.msra.mxu0 %v376
    %988 = vmatpush.msra.mxu0 %v372
    %989 = vmatpush.msra.mxu0 %v368
    %990 = vmatpush.msra.mxu0 %v364
    %991 = vmatpush.msra.mxu0 %v360
    %992 = vmatpush.msra.mxu0 %v356
    %993 = vmatpush.msra.mxu0 %v352
    %994 = vmatpush.msra.mxu0 %v348
    %995 = vmatpush.msra.mxu0 %v344
    %996 = vmatmul.f32.gmra.mxu0 %v551
    %v997 = vpop.f32.mrf.mxu0
    %v998 = vadd.f32 %v978, %v997
    %999 = vdwg.mxu0
    %1000 = vmatpush.msra.mxu0 %v468
    %1001 = vmatpush.msra.mxu0 %v464
    %1002 = vmatpush.msra.mxu0 %v460
    %1003 = vmatpush.msra.mxu0 %v456
    %1004 = vmatpush.msra.mxu0 %v452
    %1005 = vmatpush.msra.mxu0 %v448
    %1006 = vmatpush.msra.mxu0 %v444
    %1007 = vmatpush.msra.mxu0 %v440
    %1008 = vmatpush.msra.mxu0 %v436
    %1009 = vmatpush.msra.mxu0 %v432
    %1010 = vmatpush.msra.mxu0 %v428
    %1011 = vmatpush.msra.mxu0 %v424
    %1012 = vmatpush.msra.mxu0 %v420
    %1013 = vmatpush.msra.mxu0 %v416
    %1014 = vmatpush.msra.mxu0 %v412
    %1015 = vmatpush.msra.mxu0 %v408
    %1016 = vmatmul.f32.gmra.mxu0 %v552
    %v1017 = vpop.f32.mrf.mxu0
    %v1018 = vadd.f32 %v998, %v1017
    %1019 = vdwg.mxu0
    %1020 = vmatpush.msra.mxu0 %v532
    %1021 = vmatpush.msra.mxu0 %v528
    %1022 = vmatpush.msra.mxu0 %v524
    %1023 = vmatpush.msra.mxu0 %v520
    %1024 = vmatpush.msra.mxu0 %v516
    %1025 = vmatpush.msra.mxu0 %v512
    %1026 = vmatpush.msra.mxu0 %v508
    %1027 = vmatpush.msra.mxu0 %v504
    %1028 = vmatpush.msra.mxu0 %v500
    %1029 = vmatpush.msra.mxu0 %v496
    %1030 = vmatpush.msra.mxu0 %v492
    %1031 = vmatpush.msra.mxu0 %v488
    %1032 = vmatpush.msra.mxu0 %v484
    %1033 = vmatpush.msra.mxu0 %v480
    %1034 = vmatpush.msra.mxu0 %v476
    %1035 = vmatpush.msra.mxu0 %v472
    %1036 = vmatmul.f32.gmra.mxu0 %v553
    %v1037 = vpop.f32.mrf.mxu0
    %v1038 = vadd.f32 %v1018, %v1037
    %1039 = vdwg.mxu0
    %vm1040 = vcmp.ge.f32.partialorder %v678, 0.0
    %vm1041 = vcmp.ge.f32.partialorder %v798, 0.0
    %vm1042 = vcmp.ge.f32.partialorder %v918, 0.0
    %vm1043 = vcmp.ge.f32.partialorder %v1038, 0.0
    %v1044 = vmul.f32 %v678, 0.01
    %v1045 = vmul.f32 %v798, 0.01
    %v1046 = vmul.f32 %v918, 0.01
    %v1047 = vmul.f32 %v1038, 0.01
    %v1048 = vsel %vm1040, %v678, %v1044
    %v1049 = vsel %vm1041, %v798, %v1045
    %v1050 = vsel %vm1042, %v918, %v1046
    %v1051 = vsel %vm1043, %v1038, %v1047
    %v1052 = vld [vmem:[#allocation8] sm:$0xff]
    %v1053 = vld [vmem:[#allocation8 + $0x8] sm:$0xff]
    %v1054 = vld [vmem:[#allocation8 + $0x10] sm:$0xff]
    %v1055 = vld [vmem:[#allocation8 + $0x18] sm:$0xff]
    %v1056 = vld [vmem:[#allocation8 + $0x20] sm:$0xff]
    %v1057 = vld [vmem:[#allocation8 + $0x28] sm:$0xff]
    %v1058 = vld [vmem:[#allocation8 + $0x30] sm:$0xff]
    %v1059 = vld [vmem:[#allocation8 + $0x38] sm:$0xff]
    %v1060 = vld [vmem:[#allocation8 + $0x40] sm:$0xff]
    %v1061 = vld [vmem:[#allocation8 + $0x48] sm:$0xff]
    %v1062 = vld [vmem:[#allocation8 + $0x50] sm:$0xff]
    %v1063 = vld [vmem:[#allocation8 + $0x58] sm:$0xff]
    %v1064 = vld [vmem:[#allocation8 + $0x60] sm:$0xff]
    %v1065 = vld [vmem:[#allocation8 + $0x68] sm:$0xff]
    %v1066 = vld [vmem:[#allocation8 + $0x70] sm:$0xff]
    %v1067 = vld [vmem:[#allocation8 + $0x78] sm:$0xff]
    %v1068 = vld [vmem:[#allocation8 + $0x80] sm:$0xff]
    %v1069 = vld [vmem:[#allocation8 + $0x88] sm:$0xff]
    %v1070 = vld [vmem:[#allocation8 + $0x90] sm:$0xff]
    %v1071 = vld [vmem:[#allocation8 + $0x98] sm:$0xff]
    %v1072 = vld [vmem:[#allocation8 + $0xa0] sm:$0xff]
    %v1073 = vld [vmem:[#allocation8 + $0xa8] sm:$0xff]
    %v1074 = vld [vmem:[#allocation8 + $0xb0] sm:$0xff]
    %v1075 = vld [vmem:[#allocation8 + $0xb8] sm:$0xff]
    %v1076 = vld [vmem:[#allocation8 + $0xc0] sm:$0xff]
    %v1077 = vld [vmem:[#allocation8 + $0xc8] sm:$0xff]
    %v1078 = vld [vmem:[#allocation8 + $0xd0] sm:$0xff]
    %v1079 = vld [vmem:[#allocation8 + $0xd8] sm:$0xff]
    %v1080 = vld [vmem:[#allocation8 + $0xe0] sm:$0xff]
    %v1081 = vld [vmem:[#allocation8 + $0xe8] sm:$0xff]
    %v1082 = vld [vmem:[#allocation8 + $0xf0] sm:$0xff]
    %v1083 = vld [vmem:[#allocation8 + $0xf8] sm:$0xff]
    %v1084 = vld [vmem:[#allocation8 + $0x100] sm:$0xff]
    %v1085 = vld [vmem:[#allocation8 + $0x108] sm:$0xff]
    %v1086 = vld [vmem:[#allocation8 + $0x110] sm:$0xff]
    %v1087 = vld [vmem:[#allocation8 + $0x118] sm:$0xff]
    %v1088 = vld [vmem:[#allocation8 + $0x120] sm:$0xff]
    %v1089 = vld [vmem:[#allocation8 + $0x128] sm:$0xff]
    %v1090 = vld [vmem:[#allocation8 + $0x130] sm:$0xff]
    %v1091 = vld [vmem:[#allocation8 + $0x138] sm:$0xff]
    %v1092 = vld [vmem:[#allocation8 + $0x140] sm:$0xff]
    %v1093 = vld [vmem:[#allocation8 + $0x148] sm:$0xff]
    %v1094 = vld [vmem:[#allocation8 + $0x150] sm:$0xff]
    %v1095 = vld [vmem:[#allocation8 + $0x158] sm:$0xff]
    %v1096 = vld [vmem:[#allocation8 + $0x160] sm:$0xff]
    %v1097 = vld [vmem:[#allocation8 + $0x168] sm:$0xff]
    %v1098 = vld [vmem:[#allocation8 + $0x170] sm:$0xff]
    %v1099 = vld [vmem:[#allocation8 + $0x178] sm:$0xff]
    %v1100 = vld [vmem:[#allocation8 + $0x180] sm:$0xff]
    %v1101 = vld [vmem:[#allocation8 + $0x188] sm:$0xff]
    %v1102 = vld [vmem:[#allocation8 + $0x190] sm:$0xff]
    %v1103 = vld [vmem:[#allocation8 + $0x198] sm:$0xff]
    %v1104 = vld [vmem:[#allocation8 + $0x1a0] sm:$0xff]
    %v1105 = vld [vmem:[#allocation8 + $0x1a8] sm:$0xff]
    %v1106 = vld [vmem:[#allocation8 + $0x1b0] sm:$0xff]
    %v1107 = vld [vmem:[#allocation8 + $0x1b8] sm:$0xff]
    %v1108 = vld [vmem:[#allocation8 + $0x1c0] sm:$0xff]
    %v1109 = vld [vmem:[#allocation8 + $0x1c8] sm:$0xff]
    %v1110 = vld [vmem:[#allocation8 + $0x1d0] sm:$0xff]
    %v1111 = vld [vmem:[#allocation8 + $0x1d8] sm:$0xff]
    %v1112 = vld [vmem:[#allocation8 + $0x1e0] sm:$0xff]
    %v1113 = vld [vmem:[#allocation8 + $0x1e8] sm:$0xff]
    %v1114 = vld [vmem:[#allocation8 + $0x1f0] sm:$0xff]
    %v1115 = vld [vmem:[#allocation8 + $0x1f8] sm:$0xff]
    %v1116 = vld [vmem:[#allocation8 + $0x200] sm:$0xff]
    %v1117 = vld [vmem:[#allocation8 + $0x208] sm:$0xff]
    %v1118 = vld [vmem:[#allocation8 + $0x210] sm:$0xff]
    %v1119 = vld [vmem:[#allocation8 + $0x218] sm:$0xff]
    %v1120 = vld [vmem:[#allocation8 + $0x220] sm:$0xff]
    %v1121 = vld [vmem:[#allocation8 + $0x228] sm:$0xff]
    %v1122 = vld [vmem:[#allocation8 + $0x230] sm:$0xff]
    %v1123 = vld [vmem:[#allocation8 + $0x238] sm:$0xff]
    %v1124 = vld [vmem:[#allocation8 + $0x240] sm:$0xff]
    %v1125 = vld [vmem:[#allocation8 + $0x248] sm:$0xff]
    %v1126 = vld [vmem:[#allocation8 + $0x250] sm:$0xff]
    %v1127 = vld [vmem:[#allocation8 + $0x258] sm:$0xff]
    %v1128 = vld [vmem:[#allocation8 + $0x260] sm:$0xff]
    %v1129 = vld [vmem:[#allocation8 + $0x268] sm:$0xff]
    %v1130 = vld [vmem:[#allocation8 + $0x270] sm:$0xff]
    %v1131 = vld [vmem:[#allocation8 + $0x278] sm:$0xff]
    %v1132 = vld [vmem:[#allocation8 + $0x280] sm:$0xff]
    %v1133 = vld [vmem:[#allocation8 + $0x288] sm:$0xff]
    %v1134 = vld [vmem:[#allocation8 + $0x290] sm:$0xff]
    %v1135 = vld [vmem:[#allocation8 + $0x298] sm:$0xff]
    %v1136 = vld [vmem:[#allocation8 + $0x2a0] sm:$0xff]
    %v1137 = vld [vmem:[#allocation8 + $0x2a8] sm:$0xff]
    %v1138 = vld [vmem:[#allocation8 + $0x2b0] sm:$0xff]
    %v1139 = vld [vmem:[#allocation8 + $0x2b8] sm:$0xff]
    %v1140 = vld [vmem:[#allocation8 + $0x2c0] sm:$0xff]
    %v1141 = vld [vmem:[#allocation8 + $0x2c8] sm:$0xff]
    %v1142 = vld [vmem:[#allocation8 + $0x2d0] sm:$0xff]
    %v1143 = vld [vmem:[#allocation8 + $0x2d8] sm:$0xff]
    %v1144 = vld [vmem:[#allocation8 + $0x2e0] sm:$0xff]
    %v1145 = vld [vmem:[#allocation8 + $0x2e8] sm:$0xff]
    %v1146 = vld [vmem:[#allocation8 + $0x2f0] sm:$0xff]
    %v1147 = vld [vmem:[#allocation8 + $0x2f8] sm:$0xff]
    %v1148 = vld [vmem:[#allocation8 + $0x300] sm:$0xff]
    %v1149 = vld [vmem:[#allocation8 + $0x308] sm:$0xff]
    %v1150 = vld [vmem:[#allocation8 + $0x310] sm:$0xff]
    %v1151 = vld [vmem:[#allocation8 + $0x318] sm:$0xff]
    %v1152 = vld [vmem:[#allocation8 + $0x320] sm:$0xff]
    %v1153 = vld [vmem:[#allocation8 + $0x328] sm:$0xff]
    %v1154 = vld [vmem:[#allocation8 + $0x330] sm:$0xff]
    %v1155 = vld [vmem:[#allocation8 + $0x338] sm:$0xff]
    %v1156 = vld [vmem:[#allocation8 + $0x340] sm:$0xff]
    %v1157 = vld [vmem:[#allocation8 + $0x348] sm:$0xff]
    %v1158 = vld [vmem:[#allocation8 + $0x350] sm:$0xff]
    %v1159 = vld [vmem:[#allocation8 + $0x358] sm:$0xff]
    %v1160 = vld [vmem:[#allocation8 + $0x360] sm:$0xff]
    %v1161 = vld [vmem:[#allocation8 + $0x368] sm:$0xff]
    %v1162 = vld [vmem:[#allocation8 + $0x370] sm:$0xff]
    %v1163 = vld [vmem:[#allocation8 + $0x378] sm:$0xff]
    %v1164 = vld [vmem:[#allocation8 + $0x380] sm:$0xff]
    %v1165 = vld [vmem:[#allocation8 + $0x388] sm:$0xff]
    %v1166 = vld [vmem:[#allocation8 + $0x390] sm:$0xff]
    %v1167 = vld [vmem:[#allocation8 + $0x398] sm:$0xff]
    %v1168 = vld [vmem:[#allocation8 + $0x3a0] sm:$0xff]
    %v1169 = vld [vmem:[#allocation8 + $0x3a8] sm:$0xff]
    %v1170 = vld [vmem:[#allocation8 + $0x3b0] sm:$0xff]
    %v1171 = vld [vmem:[#allocation8 + $0x3b8] sm:$0xff]
    %v1172 = vld [vmem:[#allocation8 + $0x3c0] sm:$0xff]
    %v1173 = vld [vmem:[#allocation8 + $0x3c8] sm:$0xff]
    %v1174 = vld [vmem:[#allocation8 + $0x3d0] sm:$0xff]
    %v1175 = vld [vmem:[#allocation8 + $0x3d8] sm:$0xff]
    %v1176 = vld [vmem:[#allocation8 + $0x3e0] sm:$0xff]
    %v1177 = vld [vmem:[#allocation8 + $0x3e8] sm:$0xff]
    %v1178 = vld [vmem:[#allocation8 + $0x3f0] sm:$0xff]
    %v1179 = vld [vmem:[#allocation8 + $0x3f8] sm:$0xff]
    %v1180 = vld [vmem:[#allocation10] sm:$0x3]
    %v1182 = vperm.slane %v1180, 0
    %v1183 = vperm.slane %v1180, 1
    %1186 = vmatpush.msra.mxu0 %v1082
    %1187 = vmatpush.msra.mxu0 %v1080
    %1188 = vmatpush.msra.mxu0 %v1078
    %1189 = vmatpush.msra.mxu0 %v1076
    %1190 = vmatpush.msra.mxu0 %v1074
    %1191 = vmatpush.msra.mxu0 %v1072
    %1192 = vmatpush.msra.mxu0 %v1070
    %1193 = vmatpush.msra.mxu0 %v1068
    %1194 = vmatpush.msra.mxu0 %v1066
    %1195 = vmatpush.msra.mxu0 %v1064
    %1196 = vmatpush.msra.mxu0 %v1062
    %1197 = vmatpush.msra.mxu0 %v1060
    %1198 = vmatpush.msra.mxu0 %v1058
    %1199 = vmatpush.msra.mxu0 %v1056
    %1200 = vmatpush.msra.mxu0 %v1054
    %1201 = vmatpush.msra.mxu0 %v1052
    %1202 = vmatmul.f32.gmra.mxu0 %v1048
    %v1203 = vpop.f32.mrf.mxu0
    %v1204 = vadd.f32 %v1182, %v1203
    %1205 = vdwg.mxu0
    %1206 = vmatpush.msra.mxu0 %v1114
    %1207 = vmatpush.msra.mxu0 %v1112
    %1208 = vmatpush.msra.mxu0 %v1110
    %1209 = vmatpush.msra.mxu0 %v1108
    %1210 = vmatpush.msra.mxu0 %v1106
    %1211 = vmatpush.msra.mxu0 %v1104
    %1212 = vmatpush.msra.mxu0 %v1102
    %1213 = vmatpush.msra.mxu0 %v1100
    %1214 = vmatpush.msra.mxu0 %v1098
    %1215 = vmatpush.msra.mxu0 %v1096
    %1216 = vmatpush.msra.mxu0 %v1094
    %1217 = vmatpush.msra.mxu0 %v1092
    %1218 = vmatpush.msra.mxu0 %v1090
    %1219 = vmatpush.msra.mxu0 %v1088
    %1220 = vmatpush.msra.mxu0 %v1086
    %1221 = vmatpush.msra.mxu0 %v1084
    %1222 = vmatmul.f32.gmra.mxu0 %v1049
    %v1223 = vpop.f32.mrf.mxu0
    %v1224 = vadd.f32 %v1204, %v1223
    %1225 = vdwg.mxu0
    %1226 = vmatpush.msra.mxu0 %v1146
    %1227 = vmatpush.msra.mxu0 %v1144
    %1228 = vmatpush.msra.mxu0 %v1142
    %1229 = vmatpush.msra.mxu0 %v1140
    %1230 = vmatpush.msra.mxu0 %v1138
    %1231 = vmatpush.msra.mxu0 %v1136
    %1232 = vmatpush.msra.mxu0 %v1134
    %1233 = vmatpush.msra.mxu0 %v1132
    %1234 = vmatpush.msra.mxu0 %v1130
    %1235 = vmatpush.msra.mxu0 %v1128
    %1236 = vmatpush.msra.mxu0 %v1126
    %1237 = vmatpush.msra.mxu0 %v1124
    %1238 = vmatpush.msra.mxu0 %v1122
    %1239 = vmatpush.msra.mxu0 %v1120
    %1240 = vmatpush.msra.mxu0 %v1118
    %1241 = vmatpush.msra.mxu0 %v1116
    %1242 = vmatmul.f32.gmra.mxu0 %v1050
    %v1243 = vpop.f32.mrf.mxu0
    %v1244 = vadd.f32 %v1224, %v1243
    %1245 = vdwg.mxu0
    %1246 = vmatpush.msra.mxu0 %v1178
    %1247 = vmatpush.msra.mxu0 %v1176
    %1248 = vmatpush.msra.mxu0 %v1174
    %1249 = vmatpush.msra.mxu0 %v1172
    %1250 = vmatpush.msra.mxu0 %v1170
    %1251 = vmatpush.msra.mxu0 %v1168
    %1252 = vmatpush.msra.mxu0 %v1166
    %1253 = vmatpush.msra.mxu0 %v1164
    %1254 = vmatpush.msra.mxu0 %v1162
    %1255 = vmatpush.msra.mxu0 %v1160
    %1256 = vmatpush.msra.mxu0 %v1158
    %1257 = vmatpush.msra.mxu0 %v1156
    %1258 = vmatpush.msra.mxu0 %v1154
    %1259 = vmatpush.msra.mxu0 %v1152
    %1260 = vmatpush.msra.mxu0 %v1150
    %1261 = vmatpush.msra.mxu0 %v1148
    %1262 = vmatmul.f32.gmra.mxu0 %v1051
    %v1263 = vpop.f32.mrf.mxu0
    %v1264 = vadd.f32 %v1244, %v1263
    %1265 = vdwg.mxu0
    %1266 = vmatpush.msra.mxu0 %v1083
    %1267 = vmatpush.msra.mxu0 %v1081
    %1268 = vmatpush.msra.mxu0 %v1079
    %1269 = vmatpush.msra.mxu0 %v1077
    %1270 = vmatpush.msra.mxu0 %v1075
    %1271 = vmatpush.msra.mxu0 %v1073
    %1272 = vmatpush.msra.mxu0 %v1071
    %1273 = vmatpush.msra.mxu0 %v1069
    %1274 = vmatpush.msra.mxu0 %v1067
    %1275 = vmatpush.msra.mxu0 %v1065
    %1276 = vmatpush.msra.mxu0 %v1063
    %1277 = vmatpush.msra.mxu0 %v1061
    %1278 = vmatpush.msra.mxu0 %v1059
    %1279 = vmatpush.msra.mxu0 %v1057
    %1280 = vmatpush.msra.mxu0 %v1055
    %1281 = vmatpush.msra.mxu0 %v1053
    %1282 = vmatmul.f32.gmra.mxu0 %v1048
    %v1283 = vpop.f32.mrf.mxu0
    %v1284 = vadd.f32 %v1183, %v1283
    %1285 = vdwg.mxu0
    %1286 = vmatpush.msra.mxu0 %v1115
    %1287 = vmatpush.msra.mxu0 %v1113
    %1288 = vmatpush.msra.mxu0 %v1111
    %1289 = vmatpush.msra.mxu0 %v1109
    %1290 = vmatpush.msra.mxu0 %v1107
    %1291 = vmatpush.msra.mxu0 %v1105
    %1292 = vmatpush.msra.mxu0 %v1103
    %1293 = vmatpush.msra.mxu0 %v1101
    %1294 = vmatpush.msra.mxu0 %v1099
    %1295 = vmatpush.msra.mxu0 %v1097
    %1296 = vmatpush.msra.mxu0 %v1095
    %1297 = vmatpush.msra.mxu0 %v1093
    %1298 = vmatpush.msra.mxu0 %v1091
    %1299 = vmatpush.msra.mxu0 %v1089
    %1300 = vmatpush.msra.mxu0 %v1087
    %1301 = vmatpush.msra.mxu0 %v1085
    %1302 = vmatmul.f32.gmra.mxu0 %v1049
    %v1303 = vpop.f32.mrf.mxu0
    %v1304 = vadd.f32 %v1284, %v1303
    %1305 = vdwg.mxu0
    %1306 = vmatpush.msra.mxu0 %v1147
    %1307 = vmatpush.msra.mxu0 %v1145
    %1308 = vmatpush.msra.mxu0 %v1143
    %1309 = vmatpush.msra.mxu0 %v1141
    %1310 = vmatpush.msra.mxu0 %v1139
    %1311 = vmatpush.msra.mxu0 %v1137
    %1312 = vmatpush.msra.mxu0 %v1135
    %1313 = vmatpush.msra.mxu0 %v1133
    %1314 = vmatpush.msra.mxu0 %v1131
    %1315 = vmatpush.msra.mxu0 %v1129
    %1316 = vmatpush.msra.mxu0 %v1127
    %1317 = vmatpush.msra.mxu0 %v1125
    %1318 = vmatpush.msra.mxu0 %v1123
    %1319 = vmatpush.msra.mxu0 %v1121
    %1320 = vmatpush.msra.mxu0 %v1119
    %1321 = vmatpush.msra.mxu0 %v1117
    %1322 = vmatmul.f32.gmra.mxu0 %v1050
    %v1323 = vpop.f32.mrf.mxu0
    %v1324 = vadd.f32 %v1304, %v1323
    %1325 = vdwg.mxu0
    %1326 = vmatpush.msra.mxu0 %v1179
    %1327 = vmatpush.msra.mxu0 %v1177
    %1328 = vmatpush.msra.mxu0 %v1175
    %1329 = vmatpush.msra.mxu0 %v1173
    %1330 = vmatpush.msra.mxu0 %v1171
    %1331 = vmatpush.msra.mxu0 %v1169
    %1332 = vmatpush.msra.mxu0 %v1167
    %1333 = vmatpush.msra.mxu0 %v1165
    %1334 = vmatpush.msra.mxu0 %v1163
    %1335 = vmatpush.msra.mxu0 %v1161
    %1336 = vmatpush.msra.mxu0 %v1159
    %1337 = vmatpush.msra.mxu0 %v1157
    %1338 = vmatpush.msra.mxu0 %v1155
    %1339 = vmatpush.msra.mxu0 %v1153
    %1340 = vmatpush.msra.mxu0 %v1151
    %1341 = vmatpush.msra.mxu0 %v1149
    %1342 = vmatmul.f32.gmra.mxu0 %v1051
    %v1343 = vpop.f32.mrf.mxu0
    %v1344 = vadd.f32 %v1324, %v1343
    %1345 = vdwg.mxu0
    %vm1346 = vcmp.ge.f32.partialorder %v1264, 0.0
    %vm1347 = vcmp.ge.f32.partialorder %v1344, 0.0
    %v1348 = vmul.f32 %v1264, 0.01
    %v1349 = vmul.f32 %v1344, 0.01
    %v1350 = vsel %vm1346, %v1264, %v1348
    %v1351 = vsel %vm1347, %v1344, %v1349
    %v1352 = vld [vmem:[#allocation11] sm:$0xff]
    %v1353 = vld [vmem:[#allocation11 + $0x8] sm:$0xff]
    %v1354 = vld [vmem:[#allocation11 + $0x10] sm:$0xff]
    %v1355 = vld [vmem:[#allocation11 + $0x18] sm:$0xff]
    %v1356 = vld [vmem:[#allocation11 + $0x20] sm:$0xff]
    %v1357 = vld [vmem:[#allocation11 + $0x28] sm:$0xff]
    %v1358 = vld [vmem:[#allocation11 + $0x30] sm:$0xff]
    %v1359 = vld [vmem:[#allocation11 + $0x38] sm:$0xff]
    %v1360 = vld [vmem:[#allocation11 + $0x40] sm:$0xff]
    %v1361 = vld [vmem:[#allocation11 + $0x48] sm:$0xff]
    %v1362 = vld [vmem:[#allocation11 + $0x50] sm:$0xff]
    %v1363 = vld [vmem:[#allocation11 + $0x58] sm:$0xff]
    %v1364 = vld [vmem:[#allocation11 + $0x60] sm:$0xff]
    %v1365 = vld [vmem:[#allocation11 + $0x68] sm:$0xff]
    %v1366 = vld [vmem:[#allocation11 + $0x70] sm:$0xff]
    %v1367 = vld [vmem:[#allocation11 + $0x78] sm:$0xff]
    %v1368 = vld [vmem:[#allocation11 + $0x80] sm:$0xff]
    %v1369 = vld [vmem:[#allocation11 + $0x88] sm:$0xff]
    %v1370 = vld [vmem:[#allocation11 + $0x90] sm:$0xff]
    %v1371 = vld [vmem:[#allocation11 + $0x98] sm:$0xff]
    %v1372 = vld [vmem:[#allocation11 + $0xa0] sm:$0xff]
    %v1373 = vld [vmem:[#allocation11 + $0xa8] sm:$0xff]
    %v1374 = vld [vmem:[#allocation11 + $0xb0] sm:$0xff]
    %v1375 = vld [vmem:[#allocation11 + $0xb8] sm:$0xff]
    %v1376 = vld [vmem:[#allocation11 + $0xc0] sm:$0xff]
    %v1377 = vld [vmem:[#allocation11 + $0xc8] sm:$0xff]
    %v1378 = vld [vmem:[#allocation11 + $0xd0] sm:$0xff]
    %v1379 = vld [vmem:[#allocation11 + $0xd8] sm:$0xff]
    %v1380 = vld [vmem:[#allocation11 + $0xe0] sm:$0xff]
    %v1381 = vld [vmem:[#allocation11 + $0xe8] sm:$0xff]
    %v1382 = vld [vmem:[#allocation11 + $0xf0] sm:$0xff]
    %v1383 = vld [vmem:[#allocation11 + $0xf8] sm:$0xff]
    %v1384 = vld [vmem:[#allocation13] sm:$0x1]
    %v1386 = vperm.slane %v1384, 0
    %1388 = vmatpush.msra.mxu0 %v1367
    %1389 = vmatpush.msra.mxu0 %v1366
    %1390 = vmatpush.msra.mxu0 %v1365
    %1391 = vmatpush.msra.mxu0 %v1364
    %1392 = vmatpush.msra.mxu0 %v1363
    %1393 = vmatpush.msra.mxu0 %v1362
    %1394 = vmatpush.msra.mxu0 %v1361
    %1395 = vmatpush.msra.mxu0 %v1360
    %1396 = vmatpush.msra.mxu0 %v1359
    %1397 = vmatpush.msra.mxu0 %v1358
    %1398 = vmatpush.msra.mxu0 %v1357
    %1399 = vmatpush.msra.mxu0 %v1356
    %1400 = vmatpush.msra.mxu0 %v1355
    %1401 = vmatpush.msra.mxu0 %v1354
    %1402 = vmatpush.msra.mxu0 %v1353
    %1403 = vmatpush.msra.mxu0 %v1352
    %1404 = vmatmul.f32.gmra.mxu0 %v1350
    %v1405 = vpop.f32.mrf.mxu0
    %v1406 = vadd.f32 %v1386, %v1405
    %1407 = vdwg.mxu0
    %1408 = vmatpush.msra.mxu0 %v1383
    %1409 = vmatpush.msra.mxu0 %v1382
    %1410 = vmatpush.msra.mxu0 %v1381
    %1411 = vmatpush.msra.mxu0 %v1380
    %1412 = vmatpush.msra.mxu0 %v1379
    %1413 = vmatpush.msra.mxu0 %v1378
    %1414 = vmatpush.msra.mxu0 %v1377
    %1415 = vmatpush.msra.mxu0 %v1376
    %1416 = vmatpush.msra.mxu0 %v1375
    %1417 = vmatpush.msra.mxu0 %v1374
    %1418 = vmatpush.msra.mxu0 %v1373
    %1419 = vmatpush.msra.mxu0 %v1372
    %1420 = vmatpush.msra.mxu0 %v1371
    %1421 = vmatpush.msra.mxu0 %v1370
    %1422 = vmatpush.msra.mxu0 %v1369
    %1423 = vmatpush.msra.mxu0 %v1368
    %1424 = vmatmul.f32.gmra.mxu0 %v1351
    %v1425 = vpop.f32.mrf.mxu0
    %v1426 = vadd.f32 %v1406, %v1425
    %1427 = vdwg.mxu0
    %vm1428 = vcmp.ge.f32.partialorder %v1426, 0.0
    %v1429 = vmul.f32 %v1426, 0.01
    %v1430 = vsel %vm1428, %v1426, %v1429
    %v1431 = vld [vmem:[#allocation14] sm:$0xff]
    %v1432 = vld [vmem:[#allocation14 + $0x8] sm:$0xff]
    %v1433 = vld [vmem:[#allocation14 + $0x10] sm:$0xff]
    %v1434 = vld [vmem:[#allocation14 + $0x18] sm:$0xff]
    %v1435 = vld [vmem:[#allocation14 + $0x20] sm:$0xff]
    %v1436 = vld [vmem:[#allocation14 + $0x28] sm:$0xff]
    %v1437 = vld [vmem:[#allocation14 + $0x30] sm:$0xff]
    %v1438 = vld [vmem:[#allocation14 + $0x38] sm:$0xff]
    %v1439 = vld [vmem:[#allocation14 + $0x40] sm:$0xff]
    %v1440 = vld [vmem:[#allocation14 + $0x48] sm:$0xff]
    %v1441 = vld [vmem:[#allocation14 + $0x50] sm:$0xff]
    %v1442 = vld [vmem:[#allocation14 + $0x58] sm:$0xff]
    %v1443 = vld [vmem:[#allocation14 + $0x60] sm:$0xff]
    %v1444 = vld [vmem:[#allocation14 + $0x68] sm:$0xff]
    %v1445 = vld [vmem:[#allocation14 + $0x70] sm:$0xff]
    %v1446 = vld [vmem:[#allocation14 + $0x78] sm:$0xff]
    %1447 = vmatpush.msra.mxu0 %v1446
    %1448 = vmatpush.msra.mxu0 %v1445
    %1449 = vmatpush.msra.mxu0 %v1444
    %1450 = vmatpush.msra.mxu0 %v1443
    %1451 = vmatpush.msra.mxu0 %v1442
    %1452 = vmatpush.msra.mxu0 %v1441
    %1453 = vmatpush.msra.mxu0 %v1440
    %1454 = vmatpush.msra.mxu0 %v1439
    %1455 = vmatpush.msra.mxu0 %v1438
    %1456 = vmatpush.msra.mxu0 %v1437
    %1457 = vmatpush.msra.mxu0 %v1436
    %1458 = vmatpush.msra.mxu0 %v1435
    %1459 = vmatpush.msra.mxu0 %v1434
    %1460 = vmatpush.msra.mxu0 %v1433
    %1461 = vmatpush.msra.mxu0 %v1432
    %1462 = vmatpush.msra.mxu0 %v1431
    %1463 = vmatmul.f32.gmra.mxu0 %v1430
    %v1464 = vpop.f32.mrf.mxu0
    %v1465 = vadd.f32 0.0, %v1464
    %1466 = vdwg.mxu0
    %1467 = vst [vmem:[#allocation16] sm:$0x3] %v1465
    // Predicated region
    $region66: #{tpu_custom_call.1} parent=1 // pred_check
      _
    $region67: #{tpu_custom_call.1} parent=1 // pred_check_branch
      %1469 = sbr.rel (0) target = $region69
    $region68: #{tpu_custom_call.1} parent=1 // pred_region
      %1471 = vsyncadd [#allocation4], 0
      %s1473 = sshll.u32 [#allocation16], 4
      %s1474 = int_to_ptr.vmem [resolvable:$true] %s1473
      %s1475 = sshll.u32 %s8, 4
      %s1476 = int_to_ptr.hbm [resolvable:$true] %s1475
      %1478 = dma.vmem_to_hbm [thread:$0]  %s1474, 32, %s1476, [#allocation4]
    $region69: #{tpu_custom_call.1} parent=1 // pred_fallthru
      _
    // Predicated region
    $region70: #{tpu_custom_call.1} parent=1 // pred_check
      _
    $region71: #{tpu_custom_call.1} parent=1 // pred_check_branch
      %1480 = sbr.rel (0) target = $region73
    $region72: #{tpu_custom_call.1} parent=1 // pred_region
      %1482 = dma.done [#allocation4], 32
    $region73: #{tpu_custom_call.1} parent=1 // pred_fallthru
      _
    %1483 = vsyncpa [#allocation3], 1
    %1484 = vsyncpa [#allocation6], 1
    %1485 = vsyncpa [#allocation9], 1
    %1486 = vsyncpa [#allocation12], 1
    %1487 = vsyncpa [#allocation15], 1
    %1488 = vsyncpa [#allocation4], 1

</llo_original>
